<compile_context>
chip_gen: v5e
topology: v5e:2x2
jax: 0.10.0
libtpu: 0.0.40
codegen_flags: <defaults>
</compile_context>

<pallas_src>
import math

import jax
import jax.numpy as jnp
from jax.experimental import pallas as pl
from jax.experimental.pallas import tpu as pltpu


# ------------------------------ fused kernel --------------------------------

def _make_policy_kernel(Bt, N, A, E, G, agent_id):
    """Builds the fused PolicyNet forward kernel (static dims baked in).

    Bt is the per-grid-step batch tile; G is n_glimpses.
    """
    f32 = jnp.float32
    bf16 = jnp.bfloat16

    def mm(a, w):
        # bf16 MXU operands, f32 accumulation (weights are stored in bf16).
        return jnp.dot(a.astype(bf16), w, preferred_element_type=f32)

    def kernel(positions_ref, static_ref, o2_ref, o3_ref, mask_ref,
               h_ref, c_ref,
               enc_s_w_ref, enc_s_b_ref, enc_pos_w_ref, enc_pos_b_ref,
               enc_d_w0_ref, enc_d_wr_ref, enc_d_b_ref,
               ps_w_ref, ps_b_ref, pd_wpos_ref, pd_wd_ref, pd_b_ref,
               lstm_wx_ref, lstm_wh_ref, lstm_b_ref,
               att_sd_ref, att_dec_w_ref, att_dec_b_ref, att_v_ref,
               logits_ref, prob_ref, logprob_ref, h_out_ref, c_out_ref):
        dim_s = static_ref.shape[-1]

        # -------- encoders (Conv1d(k=1) == per-row linear), rows fused -------
        enc_s = (mm(static_ref[...].reshape(Bt * N, dim_s), enc_s_w_ref[...])
                 + enc_s_b_ref[...])                                # [Bt*N, E]

        enc_pos = (mm(positions_ref[...].reshape(Bt * A, dim_s),
                      enc_pos_w_ref[...]) + enc_pos_b_ref[...])     # [Bt*A, E]
        enc_pos3 = enc_pos.reshape(Bt, A, E)

        # dynamic = cat(o2[..., None], repeat(o3)); the concat is folded into
        # the encoder by splitting enc_d's weight rows (row 0 <-> o2 feature).
        o3_term = mm(o3_ref[...], enc_d_wr_ref[...])                # [Bt, E]
        d_bias = (o3_term + enc_d_b_ref[...])[:, None, :]           # [Bt,1,E]
        enc_d3 = (o2_ref[...][:, :, None] * enc_d_w0_ref[...][None, :, :]
                  + d_bias)                                         # [Bt,N,E]

        # ----------------------------- projections ---------------------------
        proj_s_flat = mm(enc_s, ps_w_ref[...]) + ps_b_ref[...]      # [Bt*N, E]
        proj_s3 = proj_s_flat.reshape(Bt, N, E)                     # one reshape

        d_core = mm(enc_d3.reshape(Bt * N, E), pd_wd_ref[...])      # [Bt*N, E]

        # project_d position part depends only on the batch row: a single
        # matmul over the lane-concat of all agents' encodings (no per-agent
        # loop), against the unsplit [A*E, E] weight block.
        pos_vec = jnp.concatenate([enc_pos3[:, a, :] for a in range(A)],
                                  axis=-1)                          # [Bt, A*E]
        pos_bias = mm(pos_vec, pd_wpos_ref[...]) + pd_b_ref[...]    # [Bt, E]

        # ------ hoisted attention slab: all (G+1) heads' s/d terms at once ---
        w_sd = att_sd_ref[...]                                      # [2E,(G+1)E]
        sd_flat = jnp.concatenate([proj_s_flat, d_core], axis=-1)   # [Bt*N, 2E]
        sd_all = mm(sd_flat, w_sd).reshape(Bt, N, (G + 1) * E)
        # proj_d's per-batch (position + bias) part goes through the stacked
        # wd rows and is broadcast over nodes exactly once.
        sd_all = sd_all + mm(pos_bias, w_sd[E:, :])[:, None, :]

        # --------------- one-step LSTM (gate order i, f, g, o) ---------------
        x = enc_pos3[:, agent_id, :]                                # [Bt, E]
        h_prev = h_ref[...]
        c_prev = c_ref[...]
        gates = (mm(x, lstm_wx_ref[...]) + mm(h_prev, lstm_wh_ref[...])
                 + lstm_b_ref[...])                                 # [Bt, 4E]
        i_g = jax.nn.sigmoid(gates[:, 0 * E:1 * E])
        f_g = jax.nn.sigmoid(gates[:, 1 * E:2 * E])
        g_g = jnp.tanh(gates[:, 2 * E:3 * E])
        o_g = jax.nn.sigmoid(gates[:, 3 * E:4 * E])
        c_new = f_g * c_prev + i_g * g_g
        h_new = o_g * jnp.tanh(c_new)
        # dropout p=0 -> drop_rnn / drop_h / drop_c are identities.

        neg_mask = 100000.0 * mask_ref[...]                         # hoisted

        def head_logits(g, h_i):
            # folded decoder projection: one [Bt,E]@[E,E] dot per head.
            dec_t = mm(h_i, att_dec_w_ref[g]) + att_dec_b_ref[g]    # [Bt, E]
            t = jnp.tanh(sd_all[:, :, g * E:(g + 1) * E] + dec_t[:, None, :])
            return jnp.sum(t * att_v_ref[g][None, :, :], axis=-1)   # [Bt, N]

        # ------------------- glimpse loop (short critical path) --------------
        h_i = h_new
        for g in range(G):
            lg = head_logits(g, h_i) - neg_mask
            m = jnp.max(lg, axis=1, keepdims=True)
            e = jnp.exp(lg - m)
            p = e * pl.reciprocal(jnp.sum(e, axis=1, keepdims=True),
                                  approx=True)
            # bmm(prob.unsqueeze(1), proj_s).squeeze(1) as VPU mul + reduce.
            h_i = jnp.sum(p[:, :, None] * proj_s3, axis=1)          # [Bt, E]

        # ---------------- final attention + masked log-softmax ---------------
        lg = head_logits(G, h_i) - neg_mask
        m = jnp.max(lg, axis=1, keepdims=True)
        z = lg - m
        lse = jnp.log(jnp.sum(jnp.exp(z), axis=1, keepdims=True))
        logprob = z - lse

        logits_ref[...] = lg
        logprob_ref[...] = logprob
        prob_ref[...] = jnp.exp(logprob)
        h_out_ref[...] = h_new
        c_out_ref[...] = c_new

    return kernel


# ------------------------------ spec helpers ---------------------------------

def _const_spec(shape):
    zeros = (0,) * len(shape)
    return pl.BlockSpec(tuple(shape), lambda b: zeros)


def _batched_spec(shape, b_tile):
    rest = (0,) * (len(shape) - 1)
    return pl.BlockSpec((b_tile,) + tuple(shape[1:]), lambda b: (b,) + rest)


# ---------------------------- cost / vmem hints -------------------------------

def _cost_stats(B, N, A, E, dim_s, dim_d, G, inputs, out_shape):
    H = G + 1
    mmf = 0
    mmf += 2 * B * N * dim_s * E                    # enc_s
    mmf += 2 * B * A * dim_s * E                    # enc_pos
    mmf += 2 * B * max(dim_d - 1, 0) * E            # enc_d (o3 rows)
    mmf += 2 * B * N * E * E                        # project_s
    mmf += 2 * B * N * E * E                        # project_d dynamic rows
    mmf += 2 * B * A * E * E                        # project_d position rows
    mmf += 2 * B * E * H * E                        # pos part through stacked wd
    mmf += 2 * B * N * 2 * E * H * E                # stacked sd attention slab
    mmf += 2 * 2 * B * E * 4 * E                    # LSTM gates (x & h)
    mmf += 2 * H * B * E * E                        # folded decoder projections
    vpu = H * (B * N * E + B * N) + G * B * N * E + 6 * B * E
    trans = H * B * N * E + H * B * N + 5 * B * E
    bytes_acc = sum(math.prod(x.shape) * x.dtype.itemsize for x in inputs)
    bytes_acc += sum(4 * math.prod(s.shape) for s in out_shape)
    return int(mmf + vpu), int(trans), int(bytes_acc)


def _vmem_limit_bytes(B_tile, N, A, E, G, inputs, out_shape, n_batched):
    blk = 0
    for i, x in enumerate(inputs):
        n = math.prod(x.shape)
        if i < n_batched:
            n = (n // x.shape[0]) * B_tile
        blk += n * x.dtype.itemsize
    blk += sum(B_tile * math.prod(s.shape[1:]) * 4 for s in out_shape)
    # resident f32 intermediates: enc_s, enc_d, proj_s, d_core, sd concat,
    # sd_all ((G+1)E wide) + per-head tanh temp, plus small [B_tile, kE] rows.
    interm = (G + 8) * B_tile * N * E * 4 + 32 * B_tile * E * 4
    need = 2 * blk + interm                     # 2x: double-buffered pipeline
    return int(min(64 * 1024 * 1024, max(16 * 1024 * 1024, 4 * need)))


# --------------------------------- wrapper ------------------------------------

def policy_net_forward(params, o, n_glimpses, last_hh=None, agent_id=0):
    positions, static, o2, o3, mask = o
    B, A, dim_s = positions.shape
    N = static.shape[1]
    E = params["enc_s_w"].shape[1]
    dim_d = params["enc_d_wr"].shape[0] + 1
    G = int(n_glimpses)

    if last_hh is None:
        h_prev, c_prev = params["h0"][0], params["c0"][0]
    else:
        h_prev, c_prev = last_hh[0][0], last_hh[1][0]

    inputs = (
        positions, static, o2, o3, mask, h_prev, c_prev,
        params["enc_s_w"], params["enc_s_b"],
        params["enc_pos_w"], params["enc_pos_b"],
        params["enc_d_w0"], params["enc_d_wr"], params["enc_d_b"],
        params["project_s_w"], params["project_s_b"],
        params["project_d_w_pos"], params["project_d_w_d"], params["project_d_b"],
        params["lstm_wx"], params["lstm_wh"], params["lstm_b"],
        params["att_sd_w"], params["att_dec_w"], params["att_dec_b"],
        params["att_v"],
    )
    n_batched = 7

    # Batch grid: lets a 2-TensorCore chip (v7x) split the batch.  Fall back to
    # a single tile when B can't be split into 8-row-aligned halves.
    B_tile = B // 2 if (B % 16 == 0) else B
    grid = (B // B_tile,)

    in_specs = ([_batched_spec(x.shape, B_tile) for x in inputs[:n_batched]]
                + [_const_spec(x.shape) for x in inputs[n_batched:]])

    out_shape = (
        jax.ShapeDtypeStruct((B, N), jnp.float32),   # masked logits
        jax.ShapeDtypeStruct((B, N), jnp.float32),   # prob
        jax.ShapeDtypeStruct((B, N), jnp.float32),   # logprob
        jax.ShapeDtypeStruct((B, E), jnp.float32),   # h
        jax.ShapeDtypeStruct((B, E), jnp.float32),   # c
    )
    out_specs = tuple(_batched_spec(s.shape, B_tile) for s in out_shape)

    flops, trans, bytes_acc = _cost_stats(B, N, A, E, dim_s, dim_d, G,
                                          inputs, out_shape)
    vmem_limit = _vmem_limit_bytes(B_tile, N, A, E, G, inputs, out_shape,
                                   n_batched)

    kernel = _make_policy_kernel(B_tile, N, A, E, G, agent_id)
    logits, prob, logprob, h_new, c_new = pl.pallas_call(
        kernel,
        grid=grid,
        in_specs=in_specs,
        out_specs=out_specs,
        out_shape=out_shape,
        compiler_params=pltpu.CompilerParams(
            dimension_semantics=("parallel",),
            vmem_limit_bytes=vmem_limit),
        cost_estimate=pl.CostEstimate(flops=flops, transcendentals=trans,
                                      bytes_accessed=bytes_acc),
    )(*inputs)

    return logits, prob, logprob, (h_new[None], c_new[None])


# --------------------------- parameter initialization ------------------------

def _xavier(key, shape):
    fan_out, fan_in = shape
    bound = math.sqrt(6.0 / (fan_in + fan_out))
    return jax.random.uniform(key, shape, jnp.float32, -bound, bound)


def _init_attention_head(key, E):
    """One Attention module, pre-folded for the kernel."""
    k = jax.random.split(key, 3)
    proj_w = _xavier(k[0], (E, E))                   # [out, in]
    wa = _xavier(k[1], (E, 3 * E))                   # [out, 3E in]
    v_a = jax.random.normal(k[2], (E,), jnp.float32)
    ws = wa[:, 0 * E:1 * E].T                        # proj_s block   [E, E]
    wd = wa[:, 1 * E:2 * E].T                        # proj_d block   [E, E]
    wdec = wa[:, 2 * E:3 * E].T                      # decoder block  [E, E]
    proj_b = jnp.zeros((1, E), jnp.float32)
    wa_b = jnp.zeros((1, E), jnp.float32)
    return {
        "sd": jnp.concatenate([ws, wd], axis=0),     # [2E, E]
        "dec_w": proj_w.T @ wdec,                    # folded proj -> wa_dec
        "dec_b": proj_b @ wdec + wa_b,               # [1, E]
        "v_a": v_a[None, :],                         # [1, E]
    }


def init_policy_net(key, batch_size, n_nodes, n_agents, dim_s, dim_d,
                    dim_embed, n_glimpses):
    E, A = dim_embed, n_agents
    bf16 = jnp.bfloat16
    k = jax.random.split(key, 11)

    enc_d_w = _xavier(k[2], (E, dim_d)).T                       # [dim_d, E]
    pd = _xavier(k[4], (E, E * A + E)).T                        # [A*E + E, E]
    w_ih = _xavier(k[5], (4 * E, E))
    w_hh = _xavier(k[6], (4 * E, E))

    gl_keys = list(jax.random.split(k[10], n_glimpses)) if n_glimpses else []
    heads = ([_init_attention_head(kk, E) for kk in gl_keys]
             + [_init_attention_head(k[9], E)])                 # glimpses, att

    return {
        # weights pre-transposed as [Din, Dout]; MXU operands stored in bf16.
        "enc_s_w": _xavier(k[0], (E, dim_s)).T.astype(bf16),
        "enc_s_b": jnp.zeros((1, E), jnp.float32),
        "enc_pos_w": _xavier(k[1], (E, dim_s)).T.astype(bf16),
        "enc_pos_b": jnp.zeros((1, E), jnp.float32),
        # enc_d split: row 0 (o2 feature) stays f32 for the VPU outer product,
        # rows 1: (o3 features) feed the MXU.
        "enc_d_w0": enc_d_w[0:1, :],
        "enc_d_wr": enc_d_w[1:, :].astype(bf16),
        "enc_d_b": jnp.zeros((1, E), jnp.float32),
        "project_s_w": _xavier(k[3], (E, E)).T.astype(bf16),
        "project_s_b": jnp.zeros((1, E), jnp.float32),
        "project_d_w_pos": pd[:A * E, :].astype(bf16),          # [A*E, E]
        "project_d_w_d": pd[A * E:, :].astype(bf16),            # [E, E]
        "project_d_b": jnp.zeros((1, E), jnp.float32),
        # LSTM(E, E, 1); W_x / W_h kept separate (no lane concat of [x, h]);
        # bias = b_ih + b_hh (zeros here but present in the math).
        "lstm_wx": w_ih.T.astype(bf16),                         # [E, 4E]
        "lstm_wh": w_hh.T.astype(bf16),                         # [E, 4E]
        "lstm_b": jnp.zeros((1, 4 * E), jnp.float32),
        "h0": jax.random.normal(k[7], (1, batch_size, E), jnp.float32),
        "c0": jax.random.normal(k[8], (1, batch_size, E), jnp.float32),
        # attention heads (glimpses then final att), hoisted/folded/stacked.
        "att_sd_w": jnp.concatenate([h["sd"] for h in heads],
                                    axis=1).astype(bf16),       # [2E,(G+1)E]
        "att_dec_w": jnp.stack([h["dec_w"] for h in heads],
                               axis=0).astype(bf16),            # [G+1, E, E]
        "att_dec_b": jnp.stack([h["dec_b"] for h in heads], axis=0),
        "att_v": jnp.stack([h["v_a"] for h in heads], axis=0),
    }


# ----------------------------------- main -------------------------------------

if __name__ == "__main__":
    batch_size = 2
    n_nodes = 8
    n_agents = 3
    dim_s = 4
    dim_d = 3        # o[2] contributes 1 feature, o[3] contributes dim_d - 1
    dim_embed = 32
    n_glimpses = 1

    key = jax.random.PRNGKey(0)
    kp, k1, k2, k3, k4, k5 = jax.random.split(key, 6)

    params = init_policy_net(kp, batch_size, n_nodes, n_agents, dim_s, dim_d,
                             dim_embed, n_glimpses)

    positions = jax.random.normal(k1, (batch_size, n_agents, dim_s), jnp.float32)
    static = jax.random.normal(k2, (batch_size, n_nodes, dim_s), jnp.float32)
    o2 = jax.random.normal(k3, (batch_size, n_nodes), jnp.float32)
    o3 = jax.random.normal(k4, (batch_size, dim_d - 1), jnp.float32)
    mask = (jax.random.uniform(k5, (batch_size, n_nodes)) < 0.25).astype(jnp.float32)

    o = (positions, static, o2, o3, mask)

    logits, prob, logprob, (h, c) = policy_net_forward(
        params, o, n_glimpses=n_glimpses, last_hh=None, agent_id=0)

    jax.block_until_ready((logits, prob, logprob, h, c))

    assert logits.shape == (batch_size, n_nodes)
    assert prob.shape == (batch_size, n_nodes)
    assert logprob.shape == (batch_size, n_nodes)
    assert h.shape == (1, batch_size, dim_embed)
    assert c.shape == (1, batch_size, dim_embed)
    assert bool(jnp.all(jnp.isfinite(prob)))
    assert bool(jnp.allclose(jnp.sum(prob, axis=1), 1.0, atol=1e-4))

    print("KERNEL_OK")
</pallas_src>

<mosaic_0001>
module attributes {stable_mosaic.version = 11 : i64} {
  func.func @kernel(%arg0: i32, %arg1: memref<2x3x4xf32, #tpu.memory_space<vmem>>, %arg2: memref<2x8x4xf32, #tpu.memory_space<vmem>>, %arg3: memref<2x8xf32, #tpu.memory_space<vmem>>, %arg4: memref<2x2xf32, #tpu.memory_space<vmem>>, %arg5: memref<2x8xf32, #tpu.memory_space<vmem>>, %arg6: memref<2x32xf32, #tpu.memory_space<vmem>>, %arg7: memref<2x32xf32, #tpu.memory_space<vmem>>, %arg8: memref<4x32xbf16, #tpu.memory_space<vmem>>, %arg9: memref<1x32xf32, #tpu.memory_space<vmem>>, %arg10: memref<4x32xbf16, #tpu.memory_space<vmem>>, %arg11: memref<1x32xf32, #tpu.memory_space<vmem>>, %arg12: memref<1x32xf32, #tpu.memory_space<vmem>>, %arg13: memref<2x32xbf16, #tpu.memory_space<vmem>>, %arg14: memref<1x32xf32, #tpu.memory_space<vmem>>, %arg15: memref<32x32xbf16, #tpu.memory_space<vmem>>, %arg16: memref<1x32xf32, #tpu.memory_space<vmem>>, %arg17: memref<96x32xbf16, #tpu.memory_space<vmem>>, %arg18: memref<32x32xbf16, #tpu.memory_space<vmem>>, %arg19: memref<1x32xf32, #tpu.memory_space<vmem>>, %arg20: memref<32x128xbf16, #tpu.memory_space<vmem>>, %arg21: memref<32x128xbf16, #tpu.memory_space<vmem>>, %arg22: memref<1x128xf32, #tpu.memory_space<vmem>>, %arg23: memref<64x64xbf16, #tpu.memory_space<vmem>>, %arg24: memref<2x32x32xbf16, #tpu.memory_space<vmem>>, %arg25: memref<2x1x32xf32, #tpu.memory_space<vmem>>, %arg26: memref<2x1x32xf32, #tpu.memory_space<vmem>>, %arg27: memref<2x8xf32, #tpu.memory_space<vmem>>, %arg28: memref<2x8xf32, #tpu.memory_space<vmem>>, %arg29: memref<2x8xf32, #tpu.memory_space<vmem>>, %arg30: memref<2x32xf32, #tpu.memory_space<vmem>>, %arg31: memref<2x32xf32, #tpu.memory_space<vmem>>) attributes {dimension_semantics = [#tpu.dimension_semantics<parallel>], iteration_bounds = array<i64: 1>, scalar_prefetch = 0 : i64, scratch_operands = 0 : i64, tpu.core_type = #tpu.core_type<tc>, window_params = [{transform_indices = @transform_0, window_bounds = array<i64: 2, 3, 4>}, {transform_indices = @transform_1, window_bounds = array<i64: 2, 8, 4>}, {transform_indices = @transform_2, window_bounds = array<i64: 2, 8>}, {transform_indices = @transform_3, window_bounds = array<i64: 2, 2>}, {transform_indices = @transform_4, window_bounds = array<i64: 2, 8>}, {transform_indices = @transform_5, window_bounds = array<i64: 2, 32>}, {transform_indices = @transform_6, window_bounds = array<i64: 2, 32>}, {pipeline_mode = #tpu.pipeline_mode<synchronous>, transform_indices = @transform_7, window_bounds = array<i64: 4, 32>}, {pipeline_mode = #tpu.pipeline_mode<synchronous>, transform_indices = @transform_8, window_bounds = array<i64: 1, 32>}, {pipeline_mode = #tpu.pipeline_mode<synchronous>, transform_indices = @transform_9, window_bounds = array<i64: 4, 32>}, {pipeline_mode = #tpu.pipeline_mode<synchronous>, transform_indices = @transform_10, window_bounds = array<i64: 1, 32>}, {pipeline_mode = #tpu.pipeline_mode<synchronous>, transform_indices = @transform_11, window_bounds = array<i64: 1, 32>}, {pipeline_mode = #tpu.pipeline_mode<synchronous>, transform_indices = @transform_12, window_bounds = array<i64: 2, 32>}, {pipeline_mode = #tpu.pipeline_mode<synchronous>, transform_indices = @transform_13, window_bounds = array<i64: 1, 32>}, {pipeline_mode = #tpu.pipeline_mode<synchronous>, transform_indices = @transform_14, window_bounds = array<i64: 32, 32>}, {pipeline_mode = #tpu.pipeline_mode<synchronous>, transform_indices = @transform_15, window_bounds = array<i64: 1, 32>}, {pipeline_mode = #tpu.pipeline_mode<synchronous>, transform_indices = @transform_16, window_bounds = array<i64: 96, 32>}, {pipeline_mode = #tpu.pipeline_mode<synchronous>, transform_indices = @transform_17, window_bounds = array<i64: 32, 32>}, {pipeline_mode = #tpu.pipeline_mode<synchronous>, transform_indices = @transform_18, window_bounds = array<i64: 1, 32>}, {pipeline_mode = #tpu.pipeline_mode<synchronous>, transform_indices = @transform_19, window_bounds = array<i64: 32, 128>}, {pipeline_mode = #tpu.pipeline_mode<synchronous>, transform_indices = @transform_20, window_bounds = array<i64: 32, 128>}, {pipeline_mode = #tpu.pipeline_mode<synchronous>, transform_indices = @transform_21, window_bounds = array<i64: 1, 128>}, {pipeline_mode = #tpu.pipeline_mode<synchronous>, transform_indices = @transform_22, window_bounds = array<i64: 64, 64>}, {pipeline_mode = #tpu.pipeline_mode<synchronous>, transform_indices = @transform_23, window_bounds = array<i64: 2, 32, 32>}, {pipeline_mode = #tpu.pipeline_mode<synchronous>, transform_indices = @transform_24, window_bounds = array<i64: 2, 1, 32>}, {pipeline_mode = #tpu.pipeline_mode<synchronous>, transform_indices = @transform_25, window_bounds = array<i64: 2, 1, 32>}, {transform_indices = @transform_26, window_bounds = array<i64: 2, 8>}, {transform_indices = @transform_27, window_bounds = array<i64: 2, 8>}, {transform_indices = @transform_28, window_bounds = array<i64: 2, 8>}, {transform_indices = @transform_29, window_bounds = array<i64: 2, 32>}, {transform_indices = @transform_30, window_bounds = array<i64: 2, 32>}]} {
    %c0 = arith.constant 0 : index
    %c0_0 = arith.constant 0 : index
    %c0_1 = arith.constant 0 : index
    %0 = vector.load %arg2[%c0, %c0_0, %c0_1] : memref<2x8x4xf32, #tpu.memory_space<vmem>>, vector<2x8x4xf32>
    %1 = vector.shape_cast %0 : vector<2x8x4xf32> to vector<16x4xf32>
    %c0_2 = arith.constant 0 : index
    %c0_3 = arith.constant 0 : index
    %2 = vector.load %arg8[%c0_2, %c0_3] : memref<4x32xbf16, #tpu.memory_space<vmem>>, vector<4x32xbf16>
    %3 = arith.truncf %1 : vector<16x4xf32> to vector<16x4xbf16>
    %cst = arith.constant dense<0.000000e+00> : vector<16x32xf32>
    %4 = tpu.matmul %3, %2, %cst {dimension_numbers = #tpu.dot_dimension_numbers<[1], [0], [0], [1], [0, 0, 1, 1], [], []>} : vector<16x4xbf16>, vector<4x32xbf16>, vector<16x32xf32> -> vector<16x32xf32>
    %c0_4 = arith.constant 0 : index
    %c0_5 = arith.constant 0 : index
    %5 = vector.load %arg9[%c0_4, %c0_5] : memref<1x32xf32, #tpu.memory_space<vmem>>, vector<1x32xf32>
    %6 = vector.broadcast %5 : vector<1x32xf32> to vector<16x32xf32>
    %7 = arith.addf %4, %6 : vector<16x32xf32>
    %c0_6 = arith.constant 0 : index
    %c0_7 = arith.constant 0 : index
    %c0_8 = arith.constant 0 : index
    %8 = vector.load %arg1[%c0_6, %c0_7, %c0_8] : memref<2x3x4xf32, #tpu.memory_space<vmem>>, vector<2x3x4xf32>
    %9 = vector.shape_cast %8 : vector<2x3x4xf32> to vector<6x4xf32>
    %c0_9 = arith.constant 0 : index
    %c0_10 = arith.constant 0 : index
    %10 = vector.load %arg10[%c0_9, %c0_10] : memref<4x32xbf16, #tpu.memory_space<vmem>>, vector<4x32xbf16>
    %11 = arith.truncf %9 : vector<6x4xf32> to vector<6x4xbf16>
    %cst_11 = arith.constant dense<0.000000e+00> : vector<6x32xf32>
    %12 = tpu.matmul %11, %10, %cst_11 {dimension_numbers = #tpu.dot_dimension_numbers<[1], [0], [0], [1], [0, 0, 1, 1], [], []>} : vector<6x4xbf16>, vector<4x32xbf16>, vector<6x32xf32> -> vector<6x32xf32>
    %c0_12 = arith.constant 0 : index
    %c0_13 = arith.constant 0 : index
    %13 = vector.load %arg11[%c0_12, %c0_13] : memref<1x32xf32, #tpu.memory_space<vmem>>, vector<1x32xf32>
    %14 = vector.broadcast %13 : vector<1x32xf32> to vector<6x32xf32>
    %15 = arith.addf %12, %14 : vector<6x32xf32>
    %16 = vector.shape_cast %15 : vector<6x32xf32> to vector<2x3x32xf32>
    %c0_14 = arith.constant 0 : index
    %c0_15 = arith.constant 0 : index
    %17 = vector.load %arg4[%c0_14, %c0_15] : memref<2x2xf32, #tpu.memory_space<vmem>>, vector<2x2xf32>
    %c0_16 = arith.constant 0 : index
    %c0_17 = arith.constant 0 : index
    %18 = vector.load %arg13[%c0_16, %c0_17] : memref<2x32xbf16, #tpu.memory_space<vmem>>, vector<2x32xbf16>
    %19 = arith.truncf %17 : vector<2x2xf32> to vector<2x2xbf16>
    %cst_18 = arith.constant dense<0.000000e+00> : vector<2x32xf32>
    %20 = tpu.matmul %19, %18, %cst_18 {dimension_numbers = #tpu.dot_dimension_numbers<[1], [0], [0], [1], [0, 0, 1, 1], [], []>} : vector<2x2xbf16>, vector<2x32xbf16>, vector<2x32xf32> -> vector<2x32xf32>
    %c0_19 = arith.constant 0 : index
    %c0_20 = arith.constant 0 : index
    %21 = vector.load %arg14[%c0_19, %c0_20] : memref<1x32xf32, #tpu.memory_space<vmem>>, vector<1x32xf32>
    %22 = vector.broadcast %21 : vector<1x32xf32> to vector<2x32xf32>
    %23 = arith.addf %20, %22 : vector<2x32xf32>
    %24 = vector.shape_cast %23 : vector<2x32xf32> to vector<2x1x32xf32>
    %c0_21 = arith.constant 0 : index
    %c0_22 = arith.constant 0 : index
    %25 = vector.load %arg3[%c0_21, %c0_22] : memref<2x8xf32, #tpu.memory_space<vmem>>, vector<2x8xf32>
    %26 = vector.shape_cast %25 : vector<2x8xf32> to vector<2x8x1xf32>
    %c0_23 = arith.constant 0 : index
    %c0_24 = arith.constant 0 : index
    %27 = vector.load %arg12[%c0_23, %c0_24] : memref<1x32xf32, #tpu.memory_space<vmem>>, vector<1x32xf32>
    %28 = vector.shape_cast %27 : vector<1x32xf32> to vector<1x1x32xf32>
    %29 = vector.broadcast %26 : vector<2x8x1xf32> to vector<2x8x32xf32>
    %30 = vector.broadcast %28 : vector<1x1x32xf32> to vector<2x8x32xf32>
    %31 = arith.mulf %29, %30 : vector<2x8x32xf32>
    %32 = vector.broadcast %24 : vector<2x1x32xf32> to vector<2x8x32xf32>
    %33 = arith.addf %31, %32 : vector<2x8x32xf32>
    %c0_25 = arith.constant 0 : index
    %c0_26 = arith.constant 0 : index
    %34 = vector.load %arg15[%c0_25, %c0_26] : memref<32x32xbf16, #tpu.memory_space<vmem>>, vector<32x32xbf16>
    %35 = arith.truncf %7 : vector<16x32xf32> to vector<16x32xbf16>
    %cst_27 = arith.constant dense<0.000000e+00> : vector<16x32xf32>
    %36 = tpu.matmul %35, %34, %cst_27 {dimension_numbers = #tpu.dot_dimension_numbers<[1], [0], [0], [1], [0, 0, 1, 1], [], []>} : vector<16x32xbf16>, vector<32x32xbf16>, vector<16x32xf32> -> vector<16x32xf32>
    %c0_28 = arith.constant 0 : index
    %c0_29 = arith.constant 0 : index
    %37 = vector.load %arg16[%c0_28, %c0_29] : memref<1x32xf32, #tpu.memory_space<vmem>>, vector<1x32xf32>
    %38 = vector.broadcast %37 : vector<1x32xf32> to vector<16x32xf32>
    %39 = arith.addf %36, %38 : vector<16x32xf32>
    %40 = vector.shape_cast %39 : vector<16x32xf32> to vector<2x8x32xf32>
    %41 = vector.shape_cast %33 : vector<2x8x32xf32> to vector<16x32xf32>
    %c0_30 = arith.constant 0 : index
    %c0_31 = arith.constant 0 : index
    %42 = vector.load %arg18[%c0_30, %c0_31] : memref<32x32xbf16, #tpu.memory_space<vmem>>, vector<32x32xbf16>
    %43 = arith.truncf %41 : vector<16x32xf32> to vector<16x32xbf16>
    %cst_32 = arith.constant dense<0.000000e+00> : vector<16x32xf32>
    %44 = tpu.matmul %43, %42, %cst_32 {dimension_numbers = #tpu.dot_dimension_numbers<[1], [0], [0], [1], [0, 0, 1, 1], [], []>} : vector<16x32xbf16>, vector<32x32xbf16>, vector<16x32xf32> -> vector<16x32xf32>
    %45 = vector.extract_strided_slice %16 {offsets = [0, 0, 0], sizes = [2, 1, 32], strides = [1, 1, 1]} : vector<2x3x32xf32> to vector<2x1x32xf32>
    %46 = vector.shape_cast %45 : vector<2x1x32xf32> to vector<2x32xf32>
    %47 = vector.extract_strided_slice %16 {offsets = [0, 1, 0], sizes = [2, 1, 32], strides = [1, 1, 1]} : vector<2x3x32xf32> to vector<2x1x32xf32>
    %48 = vector.shape_cast %47 : vector<2x1x32xf32> to vector<2x32xf32>
    %49 = vector.extract_strided_slice %16 {offsets = [0, 2, 0], sizes = [2, 1, 32], strides = [1, 1, 1]} : vector<2x3x32xf32> to vector<2x1x32xf32>
    %50 = vector.shape_cast %49 : vector<2x1x32xf32> to vector<2x32xf32>
    %51 = tpu.concatenate %46, %48, %50 in 1 : vector<2x32xf32>, vector<2x32xf32>, vector<2x32xf32> -> vector<2x96xf32>
    %c0_33 = arith.constant 0 : index
    %c0_34 = arith.constant 0 : index
    %52 = vector.load %arg17[%c0_33, %c0_34] : memref<96x32xbf16, #tpu.memory_space<vmem>>, vector<96x32xbf16>
    %53 = arith.truncf %51 : vector<2x96xf32> to vector<2x96xbf16>
    %cst_35 = arith.constant dense<0.000000e+00> : vector<2x32xf32>
    %54 = tpu.matmul %53, %52, %cst_35 {dimension_numbers = #tpu.dot_dimension_numbers<[1], [0], [0], [1], [0, 0, 1, 1], [], []>} : vector<2x96xbf16>, vector<96x32xbf16>, vector<2x32xf32> -> vector<2x32xf32>
    %c0_36 = arith.constant 0 : index
    %c0_37 = arith.constant 0 : index
    %55 = vector.load %arg19[%c0_36, %c0_37] : memref<1x32xf32, #tpu.memory_space<vmem>>, vector<1x32xf32>
    %56 = vector.broadcast %55 : vector<1x32xf32> to vector<2x32xf32>
    %57 = arith.addf %54, %56 : vector<2x32xf32>
    %c0_38 = arith.constant 0 : index
    %c0_39 = arith.constant 0 : index
    %58 = vector.load %arg23[%c0_38, %c0_39] : memref<64x64xbf16, #tpu.memory_space<vmem>>, vector<64x64xbf16>
    %59 = tpu.concatenate %39, %44 in 1 : vector<16x32xf32>, vector<16x32xf32> -> vector<16x64xf32>
    %60 = arith.truncf %59 : vector<16x64xf32> to vector<16x64xbf16>
    %cst_40 = arith.constant dense<0.000000e+00> : vector<16x64xf32>
    %61 = tpu.matmul %60, %58, %cst_40 {dimension_numbers = #tpu.dot_dimension_numbers<[1], [0], [0], [1], [0, 0, 1, 1], [], []>} : vector<16x64xbf16>, vector<64x64xbf16>, vector<16x64xf32> -> vector<16x64xf32>
    %62 = vector.shape_cast %61 : vector<16x64xf32> to vector<2x8x64xf32>
    %63 = vector.extract_strided_slice %58 {offsets = [32, 0], sizes = [32, 64], strides = [1, 1]} : vector<64x64xbf16> to vector<32x64xbf16>
    %64 = arith.truncf %57 : vector<2x32xf32> to vector<2x32xbf16>
    %cst_41 = arith.constant dense<0.000000e+00> : vector<2x64xf32>
    %65 = tpu.matmul %64, %63, %cst_41 {dimension_numbers = #tpu.dot_dimension_numbers<[1], [0], [0], [1], [0, 0, 1, 1], [], []>} : vector<2x32xbf16>, vector<32x64xbf16>, vector<2x64xf32> -> vector<2x64xf32>
    %66 = vector.shape_cast %65 : vector<2x64xf32> to vector<2x1x64xf32>
    %67 = vector.broadcast %66 : vector<2x1x64xf32> to vector<2x8x64xf32>
    %68 = arith.addf %62, %67 : vector<2x8x64xf32>
    %69 = vector.extract_strided_slice %16 {offsets = [0, 0, 0], sizes = [2, 1, 32], strides = [1, 1, 1]} : vector<2x3x32xf32> to vector<2x1x32xf32>
    %70 = vector.shape_cast %69 : vector<2x1x32xf32> to vector<2x32xf32>
    %c0_42 = arith.constant 0 : index
    %c0_43 = arith.constant 0 : index
    %71 = vector.load %arg6[%c0_42, %c0_43] : memref<2x32xf32, #tpu.memory_space<vmem>>, vector<2x32xf32>
    %c0_44 = arith.constant 0 : index
    %c0_45 = arith.constant 0 : index
    %72 = vector.load %arg7[%c0_44, %c0_45] : memref<2x32xf32, #tpu.memory_space<vmem>>, vector<2x32xf32>
    %c0_46 = arith.constant 0 : index
    %c0_47 = arith.constant 0 : index
    %73 = vector.load %arg20[%c0_46, %c0_47] : memref<32x128xbf16, #tpu.memory_space<vmem>>, vector<32x128xbf16>
    %74 = arith.truncf %70 : vector<2x32xf32> to vector<2x32xbf16>
    %cst_48 = arith.constant dense<0.000000e+00> : vector<2x128xf32>
    %75 = tpu.matmul %74, %73, %cst_48 {dimension_numbers = #tpu.dot_dimension_numbers<[1], [0], [0], [1], [0, 0, 1, 1], [], []>} : vector<2x32xbf16>, vector<32x128xbf16>, vector<2x128xf32> -> vector<2x128xf32>
    %c0_49 = arith.constant 0 : index
    %c0_50 = arith.constant 0 : index
    %76 = vector.load %arg21[%c0_49, %c0_50] : memref<32x128xbf16, #tpu.memory_space<vmem>>, vector<32x128xbf16>
    %77 = arith.truncf %71 : vector<2x32xf32> to vector<2x32xbf16>
    %cst_51 = arith.constant dense<0.000000e+00> : vector<2x128xf32>
    %78 = tpu.matmul %77, %76, %cst_51 {dimension_numbers = #tpu.dot_dimension_numbers<[1], [0], [0], [1], [0, 0, 1, 1], [], []>} : vector<2x32xbf16>, vector<32x128xbf16>, vector<2x128xf32> -> vector<2x128xf32>
    %79 = arith.addf %75, %78 : vector<2x128xf32>
    %c0_52 = arith.constant 0 : index
    %c0_53 = arith.constant 0 : index
    %80 = vector.load %arg22[%c0_52, %c0_53] : memref<1x128xf32, #tpu.memory_space<vmem>>, vector<1x128xf32>
    %81 = vector.broadcast %80 : vector<1x128xf32> to vector<2x128xf32>
    %82 = arith.addf %79, %81 : vector<2x128xf32>
    %83 = vector.extract_strided_slice %82 {offsets = [0, 0], sizes = [2, 32], strides = [1, 1]} : vector<2x128xf32> to vector<2x32xf32>
    %84 = arith.negf %83 : vector<2x32xf32>
    %85 = math.exp %84 : vector<2x32xf32>
    %cst_54 = arith.constant 1.000000e+00 : f32
    %86 = vector.broadcast %cst_54 : f32 to vector<2x32xf32>
    %87 = arith.addf %86, %85 : vector<2x32xf32>
    %88 = arith.divf %86, %87 : vector<2x32xf32>
    %89 = vector.extract_strided_slice %82 {offsets = [0, 32], sizes = [2, 32], strides = [1, 1]} : vector<2x128xf32> to vector<2x32xf32>
    %90 = arith.negf %89 : vector<2x32xf32>
    %91 = math.exp %90 : vector<2x32xf32>
    %cst_55 = arith.constant 1.000000e+00 : f32
    %92 = vector.broadcast %cst_55 : f32 to vector<2x32xf32>
    %93 = arith.addf %92, %91 : vector<2x32xf32>
    %94 = arith.divf %92, %93 : vector<2x32xf32>
    %95 = vector.extract_strided_slice %82 {offsets = [0, 64], sizes = [2, 32], strides = [1, 1]} : vector<2x128xf32> to vector<2x32xf32>
    %96 = math.tanh %95 : vector<2x32xf32>
    %97 = vector.extract_strided_slice %82 {offsets = [0, 96], sizes = [2, 32], strides = [1, 1]} : vector<2x128xf32> to vector<2x32xf32>
    %98 = arith.negf %97 : vector<2x32xf32>
    %99 = math.exp %98 : vector<2x32xf32>
    %cst_56 = arith.constant 1.000000e+00 : f32
    %100 = vector.broadcast %cst_56 : f32 to vector<2x32xf32>
    %101 = arith.addf %100, %99 : vector<2x32xf32>
    %102 = arith.divf %100, %101 : vector<2x32xf32>
    %103 = arith.mulf %94, %72 : vector<2x32xf32>
    %104 = arith.mulf %88, %96 : vector<2x32xf32>
    %105 = arith.addf %103, %104 : vector<2x32xf32>
    %106 = math.tanh %105 : vector<2x32xf32>
    %107 = arith.mulf %102, %106 : vector<2x32xf32>
    %c0_57 = arith.constant 0 : index
    %c0_58 = arith.constant 0 : index
    %108 = vector.load %arg5[%c0_57, %c0_58] : memref<2x8xf32, #tpu.memory_space<vmem>>, vector<2x8xf32>
    %cst_59 = arith.constant 1.000000e+05 : f32
    %109 = vector.broadcast %cst_59 : f32 to vector<2x8xf32>
    %110 = arith.mulf %109, %108 : vector<2x8xf32>
    %c0_60 = arith.constant 0 : index
    %c0_61 = arith.constant 0 : index
    %c0_62 = arith.constant 0 : index
    %111 = vector.load %arg24[%c0_60, %c0_61, %c0_62] : memref<2x32x32xbf16, #tpu.memory_space<vmem>>, vector<1x32x32xbf16>
    %112 = vector.shape_cast %111 : vector<1x32x32xbf16> to vector<32x32xbf16>
    %113 = arith.truncf %107 : vector<2x32xf32> to vector<2x32xbf16>
    %cst_63 = arith.constant dense<0.000000e+00> : vector<2x32xf32>
    %114 = tpu.matmul %113, %112, %cst_63 {dimension_numbers = #tpu.dot_dimension_numbers<[1], [0], [0], [1], [0, 0, 1, 1], [], []>} : vector<2x32xbf16>, vector<32x32xbf16>, vector<2x32xf32> -> vector<2x32xf32>
    %c0_64 = arith.constant 0 : index
    %c0_65 = arith.constant 0 : index
    %c0_66 = arith.constant 0 : index
    %115 = vector.load %arg25[%c0_64, %c0_65, %c0_66] : memref<2x1x32xf32, #tpu.memory_space<vmem>>, vector<1x1x32xf32>
    %116 = vector.shape_cast %115 : vector<1x1x32xf32> to vector<1x32xf32>
    %117 = vector.broadcast %116 : vector<1x32xf32> to vector<2x32xf32>
    %118 = arith.addf %114, %117 : vector<2x32xf32>
    %119 = vector.extract_strided_slice %68 {offsets = [0, 0, 0], sizes = [2, 8, 32], strides = [1, 1, 1]} : vector<2x8x64xf32> to vector<2x8x32xf32>
    %120 = vector.shape_cast %118 : vector<2x32xf32> to vector<2x1x32xf32>
    %121 = vector.broadcast %120 : vector<2x1x32xf32> to vector<2x8x32xf32>
    %122 = arith.addf %119, %121 : vector<2x8x32xf32>
    %123 = math.tanh %122 : vector<2x8x32xf32>
    %c0_67 = arith.constant 0 : index
    %c0_68 = arith.constant 0 : index
    %c0_69 = arith.constant 0 : index
    %124 = vector.load %arg26[%c0_67, %c0_68, %c0_69] : memref<2x1x32xf32, #tpu.memory_space<vmem>>, vector<1x1x32xf32>
    %125 = vector.shape_cast %124 : vector<1x1x32xf32> to vector<1x32xf32>
    %126 = vector.shape_cast %125 : vector<1x32xf32> to vector<1x1x32xf32>
    %127 = vector.broadcast %126 : vector<1x1x32xf32> to vector<2x8x32xf32>
    %128 = arith.mulf %123, %127 : vector<2x8x32xf32>
    %cst_70 = arith.constant dense<0.000000e+00> : vector<2x8xf32>
    %129 = vector.multi_reduction <add>, %128, %cst_70 [2] : vector<2x8x32xf32> to vector<2x8xf32>
    %130 = arith.subf %129, %110 : vector<2x8xf32>
    %cst_71 = arith.constant dense<0xFF800000> : vector<2xf32>
    %131 = vector.multi_reduction <maximumf>, %130, %cst_71 [1] : vector<2x8xf32> to vector<2xf32>
    %132 = vector.shape_cast %131 : vector<2xf32> to vector<2x1xf32>
    %133 = vector.broadcast %132 : vector<2x1xf32> to vector<2x8xf32>
    %134 = arith.subf %130, %133 : vector<2x8xf32>
    %135 = math.exp %134 : vector<2x8xf32>
    %cst_72 = arith.constant dense<0.000000e+00> : vector<2xf32>
    %136 = vector.multi_reduction <add>, %135, %cst_72 [1] : vector<2x8xf32> to vector<2xf32>
    %137 = vector.shape_cast %136 : vector<2xf32> to vector<2x1xf32>
    %138 = tpu.reciprocal %137 {approx = true} : vector<2x1xf32> -> vector<2x1xf32>
    %139 = vector.broadcast %138 : vector<2x1xf32> to vector<2x8xf32>
    %140 = arith.mulf %135, %139 : vector<2x8xf32>
    %141 = vector.shape_cast %140 : vector<2x8xf32> to vector<2x8x1xf32>
    %142 = vector.broadcast %141 : vector<2x8x1xf32> to vector<2x8x32xf32>
    %143 = arith.mulf %142, %40 : vector<2x8x32xf32>
    %cst_73 = arith.constant dense<0.000000e+00> : vector<2x32xf32>
    %144 = vector.multi_reduction <add>, %143, %cst_73 [1] : vector<2x8x32xf32> to vector<2x32xf32>
    %c1 = arith.constant 1 : index
    %c0_74 = arith.constant 0 : index
    %c0_75 = arith.constant 0 : index
    %145 = vector.load %arg24[%c1, %c0_74, %c0_75] : memref<2x32x32xbf16, #tpu.memory_space<vmem>>, vector<1x32x32xbf16>
    %146 = vector.shape_cast %145 : vector<1x32x32xbf16> to vector<32x32xbf16>
    %147 = arith.truncf %144 : vector<2x32xf32> to vector<2x32xbf16>
    %cst_76 = arith.constant dense<0.000000e+00> : vector<2x32xf32>
    %148 = tpu.matmul %147, %146, %cst_76 {dimension_numbers = #tpu.dot_dimension_numbers<[1], [0], [0], [1], [0, 0, 1, 1], [], []>} : vector<2x32xbf16>, vector<32x32xbf16>, vector<2x32xf32> -> vector<2x32xf32>
    %c1_77 = arith.constant 1 : index
    %c0_78 = arith.constant 0 : index
    %c0_79 = arith.constant 0 : index
    %149 = vector.load %arg25[%c1_77, %c0_78, %c0_79] : memref<2x1x32xf32, #tpu.memory_space<vmem>>, vector<1x1x32xf32>
    %150 = vector.shape_cast %149 : vector<1x1x32xf32> to vector<1x32xf32>
    %151 = vector.broadcast %150 : vector<1x32xf32> to vector<2x32xf32>
    %152 = arith.addf %148, %151 : vector<2x32xf32>
    %153 = vector.extract_strided_slice %68 {offsets = [0, 0, 32], sizes = [2, 8, 32], strides = [1, 1, 1]} : vector<2x8x64xf32> to vector<2x8x32xf32>
    %154 = vector.shape_cast %152 : vector<2x32xf32> to vector<2x1x32xf32>
    %155 = vector.broadcast %154 : vector<2x1x32xf32> to vector<2x8x32xf32>
    %156 = arith.addf %153, %155 : vector<2x8x32xf32>
    %157 = math.tanh %156 : vector<2x8x32xf32>
    %c1_80 = arith.constant 1 : index
    %c0_81 = arith.constant 0 : index
    %c0_82 = arith.constant 0 : index
    %158 = vector.load %arg26[%c1_80, %c0_81, %c0_82] : memref<2x1x32xf32, #tpu.memory_space<vmem>>, vector<1x1x32xf32>
    %159 = vector.shape_cast %158 : vector<1x1x32xf32> to vector<1x32xf32>
    %160 = vector.shape_cast %159 : vector<1x32xf32> to vector<1x1x32xf32>
    %161 = vector.broadcast %160 : vector<1x1x32xf32> to vector<2x8x32xf32>
    %162 = arith.mulf %157, %161 : vector<2x8x32xf32>
    %cst_83 = arith.constant dense<0.000000e+00> : vector<2x8xf32>
    %163 = vector.multi_reduction <add>, %162, %cst_83 [2] : vector<2x8x32xf32> to vector<2x8xf32>
    %164 = arith.subf %163, %110 : vector<2x8xf32>
    %cst_84 = arith.constant dense<0xFF800000> : vector<2xf32>
    %165 = vector.multi_reduction <maximumf>, %164, %cst_84 [1] : vector<2x8xf32> to vector<2xf32>
    %166 = vector.shape_cast %165 : vector<2xf32> to vector<2x1xf32>
    %167 = vector.broadcast %166 : vector<2x1xf32> to vector<2x8xf32>
    %168 = arith.subf %164, %167 : vector<2x8xf32>
    %169 = math.exp %168 : vector<2x8xf32>
    %cst_85 = arith.constant dense<0.000000e+00> : vector<2xf32>
    %170 = vector.multi_reduction <add>, %169, %cst_85 [1] : vector<2x8xf32> to vector<2xf32>
    %171 = vector.shape_cast %170 : vector<2xf32> to vector<2x1xf32>
    %172 = math.log %171 : vector<2x1xf32>
    %173 = vector.broadcast %172 : vector<2x1xf32> to vector<2x8xf32>
    %174 = arith.subf %168, %173 : vector<2x8xf32>
    %c0_86 = arith.constant 0 : index
    %c0_87 = arith.constant 0 : index
    %175 = vector.load %arg27[%c0_86, %c0_87] : memref<2x8xf32, #tpu.memory_space<vmem>>, vector<2x8xf32>
    tpu.vector_store %arg27[%c0_86, %c0_87], %164 {strides = array<i32>} : memref<2x8xf32, #tpu.memory_space<vmem>>, vector<2x8xf32>,
    %c0_88 = arith.constant 0 : index
    %c0_89 = arith.constant 0 : index
    %176 = vector.load %arg29[%c0_88, %c0_89] : memref<2x8xf32, #tpu.memory_space<vmem>>, vector<2x8xf32>
    tpu.vector_store %arg29[%c0_88, %c0_89], %174 {strides = array<i32>} : memref<2x8xf32, #tpu.memory_space<vmem>>, vector<2x8xf32>,
    %177 = math.exp %174 : vector<2x8xf32>
    %c0_90 = arith.constant 0 : index
    %c0_91 = arith.constant 0 : index
    %178 = vector.load %arg28[%c0_90, %c0_91] : memref<2x8xf32, #tpu.memory_space<vmem>>, vector<2x8xf32>
    tpu.vector_store %arg28[%c0_90, %c0_91], %177 {strides = array<i32>} : memref<2x8xf32, #tpu.memory_space<vmem>>, vector<2x8xf32>,
    %c0_92 = arith.constant 0 : index
    %c0_93 = arith.constant 0 : index
    %179 = vector.load %arg30[%c0_92, %c0_93] : memref<2x32xf32, #tpu.memory_space<vmem>>, vector<2x32xf32>
    tpu.vector_store %arg30[%c0_92, %c0_93], %107 {strides = array<i32>} : memref<2x32xf32, #tpu.memory_space<vmem>>, vector<2x32xf32>,
    %c0_94 = arith.constant 0 : index
    %c0_95 = arith.constant 0 : index
    %180 = vector.load %arg31[%c0_94, %c0_95] : memref<2x32xf32, #tpu.memory_space<vmem>>, vector<2x32xf32>
    tpu.vector_store %arg31[%c0_94, %c0_95], %105 {strides = array<i32>} : memref<2x32xf32, #tpu.memory_space<vmem>>, vector<2x32xf32>,
    return
  }
  func.func @transform_0(%arg0: i32) -> (i32, i32, i32) {
    %c0_i32 = arith.constant 0 : i32
    %c0_i32_0 = arith.constant 0 : i32
    %c0_i32_1 = arith.constant 0 : i32
    return %arg0, %c0_i32, %c0_i32_0 : i32, i32, i32
  }
  func.func @transform_1(%arg0: i32) -> (i32, i32, i32) {
    %c0_i32 = arith.constant 0 : i32
    %c0_i32_0 = arith.constant 0 : i32
    %c0_i32_1 = arith.constant 0 : i32
    return %arg0, %c0_i32, %c0_i32_0 : i32, i32, i32
  }
  func.func @transform_2(%arg0: i32) -> (i32, i32) {
    %c0_i32 = arith.constant 0 : i32
    %c0_i32_0 = arith.constant 0 : i32
    return %arg0, %c0_i32 : i32, i32
  }
  func.func @transform_3(%arg0: i32) -> (i32, i32) {
    %c0_i32 = arith.constant 0 : i32
    %c0_i32_0 = arith.constant 0 : i32
    return %arg0, %c0_i32 : i32, i32
  }
  func.func @transform_4(%arg0: i32) -> (i32, i32) {
    %c0_i32 = arith.constant 0 : i32
    %c0_i32_0 = arith.constant 0 : i32
    return %arg0, %c0_i32 : i32, i32
  }
  func.func @transform_5(%arg0: i32) -> (i32, i32) {
    %c0_i32 = arith.constant 0 : i32
    %c0_i32_0 = arith.constant 0 : i32
    return %arg0, %c0_i32 : i32, i32
  }
  func.func @transform_6(%arg0: i32) -> (i32, i32) {
    %c0_i32 = arith.constant 0 : i32
    %c0_i32_0 = arith.constant 0 : i32
    return %arg0, %c0_i32 : i32, i32
  }
  func.func @transform_7(%arg0: i32) -> (i32, i32) {
    %c0_i32 = arith.constant 0 : i32
    %c0_i32_0 = arith.constant 0 : i32
    %c0_i32_1 = arith.constant 0 : i32
    return %c0_i32, %c0_i32_0 : i32, i32
  }
  func.func @transform_8(%arg0: i32) -> (i32, i32) {
    %c0_i32 = arith.constant 0 : i32
    %c0_i32_0 = arith.constant 0 : i32
    %c0_i32_1 = arith.constant 0 : i32
    return %c0_i32, %c0_i32_0 : i32, i32
  }
  func.func @transform_9(%arg0: i32) -> (i32, i32) {
    %c0_i32 = arith.constant 0 : i32
    %c0_i32_0 = arith.constant 0 : i32
    %c0_i32_1 = arith.constant 0 : i32
    return %c0_i32, %c0_i32_0 : i32, i32
  }
  func.func @transform_10(%arg0: i32) -> (i32, i32) {
    %c0_i32 = arith.constant 0 : i32
    %c0_i32_0 = arith.constant 0 : i32
    %c0_i32_1 = arith.constant 0 : i32
    return %c0_i32, %c0_i32_0 : i32, i32
  }
  func.func @transform_11(%arg0: i32) -> (i32, i32) {
    %c0_i32 = arith.constant 0 : i32
    %c0_i32_0 = arith.constant 0 : i32
    %c0_i32_1 = arith.constant 0 : i32
    return %c0_i32, %c0_i32_0 : i32, i32
  }
  func.func @transform_12(%arg0: i32) -> (i32, i32) {
    %c0_i32 = arith.constant 0 : i32
    %c0_i32_0 = arith.constant 0 : i32
    %c0_i32_1 = arith.constant 0 : i32
    return %c0_i32, %c0_i32_0 : i32, i32
  }
  func.func @transform_13(%arg0: i32) -> (i32, i32) {
    %c0_i32 = arith.constant 0 : i32
    %c0_i32_0 = arith.constant 0 : i32
    %c0_i32_1 = arith.constant 0 : i32
    return %c0_i32, %c0_i32_0 : i32, i32
  }
  func.func @transform_14(%arg0: i32) -> (i32, i32) {
    %c0_i32 = arith.constant 0 : i32
    %c0_i32_0 = arith.constant 0 : i32
    %c0_i32_1 = arith.constant 0 : i32
    return %c0_i32, %c0_i32_0 : i32, i32
  }
  func.func @transform_15(%arg0: i32) -> (i32, i32) {
    %c0_i32 = arith.constant 0 : i32
    %c0_i32_0 = arith.constant 0 : i32
    %c0_i32_1 = arith.constant 0 : i32
    return %c0_i32, %c0_i32_0 : i32, i32
  }
  func.func @transform_16(%arg0: i32) -> (i32, i32) {
    %c0_i32 = arith.constant 0 : i32
    %c0_i32_0 = arith.constant 0 : i32
    %c0_i32_1 = arith.constant 0 : i32
    return %c0_i32, %c0_i32_0 : i32, i32
  }
  func.func @transform_17(%arg0: i32) -> (i32, i32) {
    %c0_i32 = arith.constant 0 : i32
    %c0_i32_0 = arith.constant 0 : i32
    %c0_i32_1 = arith.constant 0 : i32
    return %c0_i32, %c0_i32_0 : i32, i32
  }
  func.func @transform_18(%arg0: i32) -> (i32, i32) {
    %c0_i32 = arith.constant 0 : i32
    %c0_i32_0 = arith.constant 0 : i32
    %c0_i32_1 = arith.constant 0 : i32
    return %c0_i32, %c0_i32_0 : i32, i32
  }
  func.func @transform_19(%arg0: i32) -> (i32, i32) {
    %c0_i32 = arith.constant 0 : i32
    %c0_i32_0 = arith.constant 0 : i32
    %c0_i32_1 = arith.constant 0 : i32
    return %c0_i32, %c0_i32_0 : i32, i32
  }
  func.func @transform_20(%arg0: i32) -> (i32, i32) {
    %c0_i32 = arith.constant 0 : i32
    %c0_i32_0 = arith.constant 0 : i32
    %c0_i32_1 = arith.constant 0 : i32
    return %c0_i32, %c0_i32_0 : i32, i32
  }
  func.func @transform_21(%arg0: i32) -> (i32, i32) {
    %c0_i32 = arith.constant 0 : i32
    %c0_i32_0 = arith.constant 0 : i32
    %c0_i32_1 = arith.constant 0 : i32
    return %c0_i32, %c0_i32_0 : i32, i32
  }
  func.func @transform_22(%arg0: i32) -> (i32, i32) {
    %c0_i32 = arith.constant 0 : i32
    %c0_i32_0 = arith.constant 0 : i32
    %c0_i32_1 = arith.constant 0 : i32
    return %c0_i32, %c0_i32_0 : i32, i32
  }
  func.func @transform_23(%arg0: i32) -> (i32, i32, i32) {
    %c0_i32 = arith.constant 0 : i32
    %c0_i32_0 = arith.constant 0 : i32
    %c0_i32_1 = arith.constant 0 : i32
    %c0_i32_2 = arith.constant 0 : i32
    return %c0_i32, %c0_i32_0, %c0_i32_1 : i32, i32, i32
  }
  func.func @transform_24(%arg0: i32) -> (i32, i32, i32) {
    %c0_i32 = arith.constant 0 : i32
    %c0_i32_0 = arith.constant 0 : i32
    %c0_i32_1 = arith.constant 0 : i32
    %c0_i32_2 = arith.constant 0 : i32
    return %c0_i32, %c0_i32_0, %c0_i32_1 : i32, i32, i32
  }
  func.func @transform_25(%arg0: i32) -> (i32, i32, i32) {
    %c0_i32 = arith.constant 0 : i32
    %c0_i32_0 = arith.constant 0 : i32
    %c0_i32_1 = arith.constant 0 : i32
    %c0_i32_2 = arith.constant 0 : i32
    return %c0_i32, %c0_i32_0, %c0_i32_1 : i32, i32, i32
  }
  func.func @transform_26(%arg0: i32) -> (i32, i32) {
    %c0_i32 = arith.constant 0 : i32
    %c0_i32_0 = arith.constant 0 : i32
    return %arg0, %c0_i32 : i32, i32
  }
  func.func @transform_27(%arg0: i32) -> (i32, i32) {
    %c0_i32 = arith.constant 0 : i32
    %c0_i32_0 = arith.constant 0 : i32
    return %arg0, %c0_i32 : i32, i32
  }
  func.func @transform_28(%arg0: i32) -> (i32, i32) {
    %c0_i32 = arith.constant 0 : i32
    %c0_i32_0 = arith.constant 0 : i32
    return %arg0, %c0_i32 : i32, i32
  }
  func.func @transform_29(%arg0: i32) -> (i32, i32) {
    %c0_i32 = arith.constant 0 : i32
    %c0_i32_0 = arith.constant 0 : i32
    return %arg0, %c0_i32 : i32, i32
  }
  func.func @transform_30(%arg0: i32) -> (i32, i32) {
    %c0_i32 = arith.constant 0 : i32
    %c0_i32_0 = arith.constant 0 : i32
    return %arg0, %c0_i32 : i32, i32
  }
}

</mosaic_0001>

<llo_original>
// kernel: tpu_custom_call.1
$region0: #{tpu_custom_call.1}
  #allocation0 [shape = 'u32[]', space=smem, size = 0x4, offset = 0x4, fixed_abs, tag = 'smem constant byte address 0x4 - core index']
  #allocation1 [shape = 'u32[72,128]{1,0:T(1,128)}', space=vmem, size = 0x9000, scoped, tag = 'internal scratch']
  %s0 = inlined_call_operand.smem [shape: u32[31], index: -1, kind: input, shape index: {}]
  %s1 = sld [smem:[%s0]]
  %s2 = scalar_lea.smem %s0, 1
  %s3 = sld [smem:[%s2]]
  %s4 = scalar_lea.smem %s0, 2
  %s5 = sld [smem:[%s4]]
  %s6 = scalar_lea.smem %s0, 3
  %s7 = sld [smem:[%s6]]
  %s8 = scalar_lea.smem %s0, 4
  %s9 = sld [smem:[%s8]]
  %s10 = scalar_lea.smem %s0, 5
  %s11 = sld [smem:[%s10]]
  %s12 = scalar_lea.smem %s0, 6
  %s13 = sld [smem:[%s12]]
  %s14 = scalar_lea.smem %s0, 7
  %s15 = sld [smem:[%s14]]
  %s16 = scalar_lea.smem %s0, 8
  %s17 = sld [smem:[%s16]]
  %s18 = scalar_lea.smem %s0, 9
  %s19 = sld [smem:[%s18]]
  %s20 = scalar_lea.smem %s0, 10
  %s21 = sld [smem:[%s20]]
  %s22 = scalar_lea.smem %s0, 11
  %s23 = sld [smem:[%s22]]
  %s24 = scalar_lea.smem %s0, 12
  %s25 = sld [smem:[%s24]]
  %s26 = scalar_lea.smem %s0, 13
  %s27 = sld [smem:[%s26]]
  %s28 = scalar_lea.smem %s0, 14
  %s29 = sld [smem:[%s28]]
  %s30 = scalar_lea.smem %s0, 15
  %s31 = sld [smem:[%s30]]
  %s32 = scalar_lea.smem %s0, 16
  %s33 = sld [smem:[%s32]]
  %s34 = scalar_lea.smem %s0, 17
  %s35 = sld [smem:[%s34]]
  %s36 = scalar_lea.smem %s0, 18
  %s37 = sld [smem:[%s36]]
  %s38 = scalar_lea.smem %s0, 19
  %s39 = sld [smem:[%s38]]
  %s40 = scalar_lea.smem %s0, 20
  %s41 = sld [smem:[%s40]]
  %s42 = scalar_lea.smem %s0, 21
  %s43 = sld [smem:[%s42]]
  %s44 = scalar_lea.smem %s0, 22
  %s45 = sld [smem:[%s44]]
  %s46 = scalar_lea.smem %s0, 23
  %s47 = sld [smem:[%s46]]
  %s48 = scalar_lea.smem %s0, 24
  %s49 = sld [smem:[%s48]]
  %s50 = scalar_lea.smem %s0, 25
  %s51 = sld [smem:[%s50]]
  %s52 = scalar_lea.smem %s0, 26
  %s53 = sld [smem:[%s52]]
  %s54 = scalar_lea.smem %s0, 27
  %s55 = sld [smem:[%s54]]
  %s56 = scalar_lea.smem %s0, 28
  %s57 = sld [smem:[%s56]]
  %s58 = scalar_lea.smem %s0, 29
  %s59 = sld [smem:[%s58]]
  %s60 = scalar_lea.smem %s0, 30
  %s61 = sld [smem:[%s60]]
  %62 = xla_tuple %s53, %s55, %s57, %s59, %s61
  %s63 = sld [smem:[#allocation0]]
  $region202: #{tpu_custom_call.1} parent=0
    _
  %s65 = ssub.s32 1, %s63
  %s66 = scalar_select 0, %s65, %s63
  $region1: #{tpu_custom_call.1} parent=0
    #allocation2 [shape = 'u8[1024]{0}', space=vmem, size = 0x400, scoped, tag = 'input window, operand 2, single buffered']
    #allocation3 [shape = 's32[1]{0}', space=sflag, size = 0x4, scoped, tag = 'scoped memory for tpu_custom_call.1']
    #allocation4 [shape = 's32[1]{0}', space=sflag, size = 0x4, scoped, tag = 'scoped memory for tpu_custom_call.1']
    #allocation5 [shape = 'u8[1024]{0}', space=vmem, size = 0x400, scoped, tag = 'input window, operand 3, single buffered']
    #allocation6 [shape = 's32[1]{0}', space=sflag, size = 0x4, scoped, tag = 'scoped memory for tpu_custom_call.1']
    #allocation7 [shape = 'u8[1024]{0}', space=vmem, size = 0x400, scoped, tag = 'input window, operand 4, single buffered']
    #allocation8 [shape = 'u8[1024]{0}', space=vmem, size = 0x400, scoped, tag = 'input window, operand 5, single buffered']
    #allocation9 [shape = 's32[1]{0}', space=sflag, size = 0x4, scoped, tag = 'scoped memory for tpu_custom_call.1']
    #allocation10 [shape = 'u8[1024]{0}', space=vmem, size = 0x400, scoped, tag = 'input window, operand 6, single buffered']
    #allocation11 [shape = 'u8[1024]{0}', space=vmem, size = 0x400, scoped, tag = 'input window, operand 7, single buffered']
    #allocation12 [shape = 's32[1]{0}', space=sflag, size = 0x4, scoped, tag = 'scoped memory for tpu_custom_call.1']
    #allocation13 [shape = 'u8[1024]{0}', space=vmem, size = 0x400, scoped, tag = 'input window, operand 9, single buffered']
    #allocation14 [shape = 'u8[512]{0}', space=vmem, size = 0x400, scoped, tag = 'input window, operand 10, single buffered']
    #allocation15 [shape = 's32[1]{0}', space=sflag, size = 0x4, scoped, tag = 'scoped memory for tpu_custom_call.1']
    #allocation16 [shape = 'u8[512]{0}', space=vmem, size = 0x400, scoped, tag = 'input window, operand 11, single buffered']
    #allocation17 [shape = 'u8[512]{0}', space=vmem, size = 0x400, scoped, tag = 'input window, operand 12, single buffered']
    #allocation18 [shape = 's32[1]{0}', space=sflag, size = 0x4, scoped, tag = 'scoped memory for tpu_custom_call.1']
    #allocation19 [shape = 'u8[512]{0}', space=vmem, size = 0x400, scoped, tag = 'input window, operand 13, single buffered']
    #allocation20 [shape = 'u8[512]{0}', space=vmem, size = 0x400, scoped, tag = 'input window, operand 15, single buffered']
    #allocation21 [shape = 's32[1]{0}', space=sflag, size = 0x4, scoped, tag = 'scoped memory for tpu_custom_call.1']
    #allocation22 [shape = 'u8[8192]{0}', space=vmem, size = 0x2000, scoped, tag = 'input window, operand 19, single buffered']
    #allocation23 [shape = 'u8[8192]{0}', space=vmem, size = 0x2000, scoped, tag = 'input window, operand 20, single buffered']
    #allocation24 [shape = 's32[1]{0}', space=sflag, size = 0x4, scoped, tag = 'scoped memory for tpu_custom_call.1']
    #allocation25 [shape = 'u8[1024]{0}', space=vmem, size = 0x400, scoped, tag = 'output window, operand 0, single buffered']
    #allocation26 [shape = 'u8[1024]{0}', space=vmem, size = 0x400, scoped, tag = 'output window, operand 1, single buffered']
    #allocation27 [shape = 's32[1]{0}', space=sflag, size = 0x4, scoped, tag = 'scoped memory for tpu_custom_call.1']
    #allocation28 [shape = 'u8[1024]{0}', space=vmem, size = 0x400, scoped, tag = 'output window, operand 2, single buffered']
    #allocation29 [shape = 'u8[1024]{0}', space=vmem, size = 0x400, scoped, tag = 'output window, operand 3, single buffered']
    #allocation30 [shape = 's32[1]{0}', space=sflag, size = 0x4, scoped, tag = 'scoped memory for tpu_custom_call.1']
    #allocation31 [shape = 'u8[1024]{0}', space=vmem, size = 0x400, scoped, tag = 'output window, operand 4, single buffered']
    %67 = vsyncpa [#allocation3], 0
    %68 = vsyncpa [#allocation6], 0
    %69 = vsyncpa [#allocation9], 0
    %70 = vsyncpa [#allocation12], 0
    %71 = vsyncpa [#allocation15], 0
    %72 = vsyncpa [#allocation18], 0
    %73 = vsyncpa [#allocation21], 0
    %74 = vsyncpa [#allocation24], 0
    %75 = vsyncpa [#allocation4], 0
    %76 = vsyncpa [#allocation27], 0
    %77 = vsyncpa [#allocation30], 0
    // Predicated region
    $region2: #{tpu_custom_call.1} parent=1 // pred_check
      _
    $region3: #{tpu_custom_call.1} parent=1 // pred_check_branch
      %79 = sbr.rel (0) target = $region5
    $region4: #{tpu_custom_call.1} parent=1 // pred_region
      _
    $region5: #{tpu_custom_call.1} parent=1 // pred_fallthru
      _
    // Predicated region
    $region6: #{tpu_custom_call.1} parent=1 // pred_check
      _
    $region7: #{tpu_custom_call.1} parent=1 // pred_check_branch
      %81 = sbr.rel (0) target = $region9
    $region8: #{tpu_custom_call.1} parent=1 // pred_region
      _
    $region9: #{tpu_custom_call.1} parent=1 // pred_fallthru
      _
    // Predicated region
    $region10: #{tpu_custom_call.1} parent=1 // pred_check
      _
    $region11: #{tpu_custom_call.1} parent=1 // pred_check_branch
      %83 = sbr.rel (0) target = $region13
    $region12: #{tpu_custom_call.1} parent=1 // pred_region
      %85 = vsyncadd [#allocation3], 0
      %s87 = sshll.u32 %s5, 4
      %s88 = int_to_ptr.hbm [resolvable:$true] %s87
      %s89 = sshll.u32 [#allocation2], 4
      %s90 = int_to_ptr.vmem [resolvable:$true] %s89
      %92 = dma.hbm_to_vmem [thread:$0]  %s88, 32, %s90, [#allocation3]
    $region13: #{tpu_custom_call.1} parent=1 // pred_fallthru
      _
    // Predicated region
    $region14: #{tpu_custom_call.1} parent=1 // pred_check
      _
    $region15: #{tpu_custom_call.1} parent=1 // pred_check_branch
      %94 = sbr.rel (0) target = $region17
    $region16: #{tpu_custom_call.1} parent=1 // pred_region
      %96 = vsyncadd [#allocation6], 0
      %s98 = sshll.u32 %s7, 4
      %s99 = int_to_ptr.hbm [resolvable:$true] %s98
      %s100 = sshll.u32 [#allocation5], 4
      %s101 = int_to_ptr.vmem [resolvable:$true] %s100
      %103 = dma.hbm_to_vmem [thread:$0]  %s99, 32, %s101, [#allocation6]
    $region17: #{tpu_custom_call.1} parent=1 // pred_fallthru
      _
    // Predicated region
    $region18: #{tpu_custom_call.1} parent=1 // pred_check
      _
    $region19: #{tpu_custom_call.1} parent=1 // pred_check_branch
      %105 = sbr.rel (0) target = $region21
    $region20: #{tpu_custom_call.1} parent=1 // pred_region
      %107 = vsyncadd [#allocation6], 0
      %s109 = sshll.u32 %s9, 4
      %s110 = int_to_ptr.hbm [resolvable:$true] %s109
      %s111 = sshll.u32 [#allocation7], 4
      %s112 = int_to_ptr.vmem [resolvable:$true] %s111
      %114 = dma.hbm_to_vmem [thread:$0]  %s110, 32, %s112, [#allocation6]
    $region21: #{tpu_custom_call.1} parent=1 // pred_fallthru
      _
    // Predicated region
    $region22: #{tpu_custom_call.1} parent=1 // pred_check
      _
    $region23: #{tpu_custom_call.1} parent=1 // pred_check_branch
      %116 = sbr.rel (0) target = $region25
    $region24: #{tpu_custom_call.1} parent=1 // pred_region
      %118 = vsyncadd [#allocation9], 0
      %s120 = sshll.u32 %s11, 4
      %s121 = int_to_ptr.hbm [resolvable:$true] %s120
      %s122 = sshll.u32 [#allocation8], 4
      %s123 = int_to_ptr.vmem [resolvable:$true] %s122
      %125 = dma.hbm_to_vmem [thread:$0]  %s121, 32, %s123, [#allocation9]
    $region25: #{tpu_custom_call.1} parent=1 // pred_fallthru
      _
    // Predicated region
    $region26: #{tpu_custom_call.1} parent=1 // pred_check
      _
    $region27: #{tpu_custom_call.1} parent=1 // pred_check_branch
      %127 = sbr.rel (0) target = $region29
    $region28: #{tpu_custom_call.1} parent=1 // pred_region
      %129 = vsyncadd [#allocation9], 0
      %s131 = sshll.u32 %s13, 4
      %s132 = int_to_ptr.hbm [resolvable:$true] %s131
      %s133 = sshll.u32 [#allocation10], 4
      %s134 = int_to_ptr.vmem [resolvable:$true] %s133
      %136 = dma.hbm_to_vmem [thread:$0]  %s132, 32, %s134, [#allocation9]
    $region29: #{tpu_custom_call.1} parent=1 // pred_fallthru
      _
    // Predicated region
    $region30: #{tpu_custom_call.1} parent=1 // pred_check
      _
    $region31: #{tpu_custom_call.1} parent=1 // pred_check_branch
      %138 = sbr.rel (0) target = $region33
    $region32: #{tpu_custom_call.1} parent=1 // pred_region
      %140 = vsyncadd [#allocation12], 0
      %s142 = sshll.u32 %s15, 4
      %s143 = int_to_ptr.hbm [resolvable:$true] %s142
      %s144 = sshll.u32 [#allocation11], 4
      %s145 = int_to_ptr.vmem [resolvable:$true] %s144
      %147 = dma.hbm_to_vmem [thread:$0]  %s143, 32, %s145, [#allocation12]
    $region33: #{tpu_custom_call.1} parent=1 // pred_fallthru
      _
    // Predicated region
    $region34: #{tpu_custom_call.1} parent=1 // pred_check
      _
    $region35: #{tpu_custom_call.1} parent=1 // pred_check_branch
      %149 = sbr.rel (0) target = $region37
    $region36: #{tpu_custom_call.1} parent=1 // pred_region
      _
    $region37: #{tpu_custom_call.1} parent=1 // pred_fallthru
      _
    // Predicated region
    $region38: #{tpu_custom_call.1} parent=1 // pred_check
      _
    $region39: #{tpu_custom_call.1} parent=1 // pred_check_branch
      %151 = sbr.rel (0) target = $region41
    $region40: #{tpu_custom_call.1} parent=1 // pred_region
      %153 = vsyncadd [#allocation12], 0
      %s155 = sshll.u32 %s19, 4
      %s156 = int_to_ptr.hbm [resolvable:$true] %s155
      %s157 = sshll.u32 [#allocation13], 4
      %s158 = int_to_ptr.vmem [resolvable:$true] %s157
      %160 = dma.hbm_to_vmem [thread:$0]  %s156, 32, %s158, [#allocation12]
    $region41: #{tpu_custom_call.1} parent=1 // pred_fallthru
      _
    // Predicated region
    $region42: #{tpu_custom_call.1} parent=1 // pred_check
      _
    $region43: #{tpu_custom_call.1} parent=1 // pred_check_branch
      %162 = sbr.rel (0) target = $region45
    $region44: #{tpu_custom_call.1} parent=1 // pred_region
      %164 = vsyncadd [#allocation15], 0
      %s166 = sshll.u32 %s21, 4
      %s167 = int_to_ptr.hbm [resolvable:$true] %s166
      %s168 = sshll.u32 [#allocation14], 4
      %s169 = int_to_ptr.vmem [resolvable:$true] %s168
      %171 = dma.hbm_to_vmem [thread:$0]  %s167, 16, %s169, [#allocation15]
    $region45: #{tpu_custom_call.1} parent=1 // pred_fallthru
      _
    // Predicated region
    $region46: #{tpu_custom_call.1} parent=1 // pred_check
      _
    $region47: #{tpu_custom_call.1} parent=1 // pred_check_branch
      %173 = sbr.rel (0) target = $region49
    $region48: #{tpu_custom_call.1} parent=1 // pred_region
      %175 = vsyncadd [#allocation15], 0
      %s177 = sshll.u32 %s23, 4
      %s178 = int_to_ptr.hbm [resolvable:$true] %s177
      %s179 = sshll.u32 [#allocation16], 4
      %s180 = int_to_ptr.vmem [resolvable:$true] %s179
      %182 = dma.hbm_to_vmem [thread:$0]  %s178, 16, %s180, [#allocation15]
    $region49: #{tpu_custom_call.1} parent=1 // pred_fallthru
      _
    // Predicated region
    $region50: #{tpu_custom_call.1} parent=1 // pred_check
      _
    $region51: #{tpu_custom_call.1} parent=1 // pred_check_branch
      %184 = sbr.rel (0) target = $region53
    $region52: #{tpu_custom_call.1} parent=1 // pred_region
      %186 = vsyncadd [#allocation18], 0
      %s188 = sshll.u32 %s25, 4
      %s189 = int_to_ptr.hbm [resolvable:$true] %s188
      %s190 = sshll.u32 [#allocation17], 4
      %s191 = int_to_ptr.vmem [resolvable:$true] %s190
      %193 = dma.hbm_to_vmem [thread:$0]  %s189, 16, %s191, [#allocation18]
    $region53: #{tpu_custom_call.1} parent=1 // pred_fallthru
      _
    // Predicated region
    $region54: #{tpu_custom_call.1} parent=1 // pred_check
      _
    $region55: #{tpu_custom_call.1} parent=1 // pred_check_branch
      %195 = sbr.rel (0) target = $region57
    $region56: #{tpu_custom_call.1} parent=1 // pred_region
      %197 = vsyncadd [#allocation18], 0
      %s199 = sshll.u32 %s27, 4
      %s200 = int_to_ptr.hbm [resolvable:$true] %s199
      %s201 = sshll.u32 [#allocation19], 4
      %s202 = int_to_ptr.vmem [resolvable:$true] %s201
      %204 = dma.hbm_to_vmem [thread:$0]  %s200, 16, %s202, [#allocation18]
    $region57: #{tpu_custom_call.1} parent=1 // pred_fallthru
      _
    // Predicated region
    $region58: #{tpu_custom_call.1} parent=1 // pred_check
      _
    $region59: #{tpu_custom_call.1} parent=1 // pred_check_branch
      %206 = sbr.rel (0) target = $region61
    $region60: #{tpu_custom_call.1} parent=1 // pred_region
      _
    $region61: #{tpu_custom_call.1} parent=1 // pred_fallthru
      _
    // Predicated region
    $region62: #{tpu_custom_call.1} parent=1 // pred_check
      _
    $region63: #{tpu_custom_call.1} parent=1 // pred_check_branch
      %208 = sbr.rel (0) target = $region65
    $region64: #{tpu_custom_call.1} parent=1 // pred_region
      %210 = vsyncadd [#allocation21], 0
      %s212 = sshll.u32 %s31, 4
      %s213 = int_to_ptr.hbm [resolvable:$true] %s212
      %s214 = sshll.u32 [#allocation20], 4
      %s215 = int_to_ptr.vmem [resolvable:$true] %s214
      %217 = dma.hbm_to_vmem [thread:$0]  %s213, 16, %s215, [#allocation21]
    $region65: #{tpu_custom_call.1} parent=1 // pred_fallthru
      _
    // Predicated region
    $region66: #{tpu_custom_call.1} parent=1 // pred_check
      _
    $region67: #{tpu_custom_call.1} parent=1 // pred_check_branch
      %219 = sbr.rel (0) target = $region69
    $region68: #{tpu_custom_call.1} parent=1 // pred_region
      _
    $region69: #{tpu_custom_call.1} parent=1 // pred_fallthru
      _
    // Predicated region
    $region70: #{tpu_custom_call.1} parent=1 // pred_check
      _
    $region71: #{tpu_custom_call.1} parent=1 // pred_check_branch
      %221 = sbr.rel (0) target = $region73
    $region72: #{tpu_custom_call.1} parent=1 // pred_region
      _
    $region73: #{tpu_custom_call.1} parent=1 // pred_fallthru
      _
    // Predicated region
    $region74: #{tpu_custom_call.1} parent=1 // pred_check
      _
    $region75: #{tpu_custom_call.1} parent=1 // pred_check_branch
      %223 = sbr.rel (0) target = $region77
    $region76: #{tpu_custom_call.1} parent=1 // pred_region
      _
    $region77: #{tpu_custom_call.1} parent=1 // pred_fallthru
      _
    // Predicated region
    $region78: #{tpu_custom_call.1} parent=1 // pred_check
      _
    $region79: #{tpu_custom_call.1} parent=1 // pred_check_branch
      %225 = sbr.rel (0) target = $region81
    $region80: #{tpu_custom_call.1} parent=1 // pred_region
      %227 = vsyncadd [#allocation21], 0
      %s228 = sshll.u32 %s39, 4
      %s229 = int_to_ptr.hbm [resolvable:$true] %s228
      %s230 = sshll.u32 [#allocation22], 4
      %s231 = int_to_ptr.vmem [resolvable:$true] %s230
      %236 = dma.hbm_to_vmem [thread:$0]  %s229, 256, %s231, [#allocation21], 64, 64, 4
    $region81: #{tpu_custom_call.1} parent=1 // pred_fallthru
      _
    // Predicated region
    $region82: #{tpu_custom_call.1} parent=1 // pred_check
      _
    $region83: #{tpu_custom_call.1} parent=1 // pred_check_branch
      %238 = sbr.rel (0) target = $region85
    $region84: #{tpu_custom_call.1} parent=1 // pred_region
      %240 = vsyncadd [#allocation24], 0
      %s241 = sshll.u32 %s41, 4
      %s242 = int_to_ptr.hbm [resolvable:$true] %s241
      %s243 = sshll.u32 [#allocation23], 4
      %s244 = int_to_ptr.vmem [resolvable:$true] %s243
      %249 = dma.hbm_to_vmem [thread:$0]  %s242, 256, %s244, [#allocation24], 64, 64, 4
    $region85: #{tpu_custom_call.1} parent=1 // pred_fallthru
      _
    // Predicated region
    $region86: #{tpu_custom_call.1} parent=1 // pred_check
      _
    $region87: #{tpu_custom_call.1} parent=1 // pred_check_branch
      %251 = sbr.rel (0) target = $region89
    $region88: #{tpu_custom_call.1} parent=1 // pred_region
      _
    $region89: #{tpu_custom_call.1} parent=1 // pred_fallthru
      _
    // Predicated region
    $region90: #{tpu_custom_call.1} parent=1 // pred_check
      _
    $region91: #{tpu_custom_call.1} parent=1 // pred_check_branch
      %253 = sbr.rel (0) target = $region93
    $region92: #{tpu_custom_call.1} parent=1 // pred_region
      _
    $region93: #{tpu_custom_call.1} parent=1 // pred_fallthru
      _
    // Predicated region
    $region94: #{tpu_custom_call.1} parent=1 // pred_check
      _
    $region95: #{tpu_custom_call.1} parent=1 // pred_check_branch
      %255 = sbr.rel (0) target = $region97
    $region96: #{tpu_custom_call.1} parent=1 // pred_region
      _
    $region97: #{tpu_custom_call.1} parent=1 // pred_fallthru
      _
    // Predicated region
    $region98: #{tpu_custom_call.1} parent=1 // pred_check
      _
    $region99: #{tpu_custom_call.1} parent=1 // pred_check_branch
      %257 = sbr.rel (0) target = $region101
    $region100: #{tpu_custom_call.1} parent=1 // pred_region
      _
    $region101: #{tpu_custom_call.1} parent=1 // pred_fallthru
      _
    // Predicated region
    $region102: #{tpu_custom_call.1} parent=1 // pred_check
      _
    $region103: #{tpu_custom_call.1} parent=1 // pred_check_branch
      %259 = sbr.rel (0) target = $region105
    $region104: #{tpu_custom_call.1} parent=1 // pred_region
      _
    $region105: #{tpu_custom_call.1} parent=1 // pred_fallthru
      _
    // Predicated region
    $region106: #{tpu_custom_call.1} parent=1 // pred_check
      _
    $region107: #{tpu_custom_call.1} parent=1 // pred_check_branch
      %261 = sbr.rel (0) target = $region109
    $region108: #{tpu_custom_call.1} parent=1 // pred_region
      %263 = dma.done [#allocation3], 32
    $region109: #{tpu_custom_call.1} parent=1 // pred_fallthru
      _
    // Predicated region
    $region110: #{tpu_custom_call.1} parent=1 // pred_check
      _
    $region111: #{tpu_custom_call.1} parent=1 // pred_check_branch
      %265 = sbr.rel (0) target = $region113
    $region112: #{tpu_custom_call.1} parent=1 // pred_region
      %267 = dma.done [#allocation6], 32
    $region113: #{tpu_custom_call.1} parent=1 // pred_fallthru
      _
    // Predicated region
    $region114: #{tpu_custom_call.1} parent=1 // pred_check
      _
    $region115: #{tpu_custom_call.1} parent=1 // pred_check_branch
      %269 = sbr.rel (0) target = $region117
    $region116: #{tpu_custom_call.1} parent=1 // pred_region
      %271 = dma.done [#allocation6], 32
    $region117: #{tpu_custom_call.1} parent=1 // pred_fallthru
      _
    // Predicated region
    $region118: #{tpu_custom_call.1} parent=1 // pred_check
      _
    $region119: #{tpu_custom_call.1} parent=1 // pred_check_branch
      %273 = sbr.rel (0) target = $region121
    $region120: #{tpu_custom_call.1} parent=1 // pred_region
      %275 = dma.done [#allocation9], 32
    $region121: #{tpu_custom_call.1} parent=1 // pred_fallthru
      _
    // Predicated region
    $region122: #{tpu_custom_call.1} parent=1 // pred_check
      _
    $region123: #{tpu_custom_call.1} parent=1 // pred_check_branch
      %277 = sbr.rel (0) target = $region125
    $region124: #{tpu_custom_call.1} parent=1 // pred_region
      %279 = dma.done [#allocation9], 32
    $region125: #{tpu_custom_call.1} parent=1 // pred_fallthru
      _
    // Predicated region
    $region126: #{tpu_custom_call.1} parent=1 // pred_check
      _
    $region127: #{tpu_custom_call.1} parent=1 // pred_check_branch
      %281 = sbr.rel (0) target = $region129
    $region128: #{tpu_custom_call.1} parent=1 // pred_region
      %283 = dma.done [#allocation12], 32
    $region129: #{tpu_custom_call.1} parent=1 // pred_fallthru
      _
    // Predicated region
    $region130: #{tpu_custom_call.1} parent=1 // pred_check
      _
    $region131: #{tpu_custom_call.1} parent=1 // pred_check_branch
      %285 = sbr.rel (0) target = $region133
    $region132: #{tpu_custom_call.1} parent=1 // pred_region
      %287 = dma.done [#allocation12], 32
    $region133: #{tpu_custom_call.1} parent=1 // pred_fallthru
      _
    // Predicated region
    $region134: #{tpu_custom_call.1} parent=1 // pred_check
      _
    $region135: #{tpu_custom_call.1} parent=1 // pred_check_branch
      %289 = sbr.rel (0) target = $region137
    $region136: #{tpu_custom_call.1} parent=1 // pred_region
      %291 = dma.done [#allocation15], 16
    $region137: #{tpu_custom_call.1} parent=1 // pred_fallthru
      _
    // Predicated region
    $region138: #{tpu_custom_call.1} parent=1 // pred_check
      _
    $region139: #{tpu_custom_call.1} parent=1 // pred_check_branch
      %293 = sbr.rel (0) target = $region141
    $region140: #{tpu_custom_call.1} parent=1 // pred_region
      %295 = dma.done [#allocation15], 16
    $region141: #{tpu_custom_call.1} parent=1 // pred_fallthru
      _
    // Predicated region
    $region142: #{tpu_custom_call.1} parent=1 // pred_check
      _
    $region143: #{tpu_custom_call.1} parent=1 // pred_check_branch
      %297 = sbr.rel (0) target = $region145
    $region144: #{tpu_custom_call.1} parent=1 // pred_region
      %299 = dma.done [#allocation18], 16
    $region145: #{tpu_custom_call.1} parent=1 // pred_fallthru
      _
    // Predicated region
    $region146: #{tpu_custom_call.1} parent=1 // pred_check
      _
    $region147: #{tpu_custom_call.1} parent=1 // pred_check_branch
      %301 = sbr.rel (0) target = $region149
    $region148: #{tpu_custom_call.1} parent=1 // pred_region
      %303 = dma.done [#allocation18], 16
    $region149: #{tpu_custom_call.1} parent=1 // pred_fallthru
      _
    // Predicated region
    $region150: #{tpu_custom_call.1} parent=1 // pred_check
      _
    $region151: #{tpu_custom_call.1} parent=1 // pred_check_branch
      %305 = sbr.rel (0) target = $region153
    $region152: #{tpu_custom_call.1} parent=1 // pred_region
      %307 = dma.done [#allocation21], 16
    $region153: #{tpu_custom_call.1} parent=1 // pred_fallthru
      _
    // Predicated region
    $region154: #{tpu_custom_call.1} parent=1 // pred_check
      _
    $region155: #{tpu_custom_call.1} parent=1 // pred_check_branch
      %309 = sbr.rel (0) target = $region157
    $region156: #{tpu_custom_call.1} parent=1 // pred_region
      %311 = dma.done [#allocation21], 256
    $region157: #{tpu_custom_call.1} parent=1 // pred_fallthru
      _
    // Predicated region
    $region158: #{tpu_custom_call.1} parent=1 // pred_check
      _
    $region159: #{tpu_custom_call.1} parent=1 // pred_check_branch
      %313 = sbr.rel (0) target = $region161
    $region160: #{tpu_custom_call.1} parent=1 // pred_region
      %315 = dma.done [#allocation24], 256
    $region161: #{tpu_custom_call.1} parent=1 // pred_fallthru
      _
    %v317 = vld [vmem:[%s3] sm:$0xff]
    %v318 = vld [vmem:[%s3 + $0x8] sm:$0xff]
    %v319 = vld [vmem:[#allocation11] sm:$0x3]
    %v320 = vpack.c.bf16 %v318, %v317
    %v321 = vld [vmem:[%s17] sm:$0x1]
    %v323 = vperm.slane %v321, 0
    %vm325 = vcmask 31744
    %v327 = vsel %vm325, %v320, 0
    %vm329 = vcmask 1041408
    %v331 = vsel %vm329, %v319, 0
    %333 = vmatpush.bf16.msra.mxu0 0
    %334 = vmatpush.bf16.msra.mxu0 0
    %335 = vmatpush.bf16.msra.mxu0 0
    %336 = vmatpush.bf16.msra.mxu0 0
    %337 = vmatpush.bf16.msra.mxu0 0
    %338 = vmatpush.bf16.msra.mxu0 0
    %339 = vmatpush.bf16.msra.mxu0 0
    %340 = vmatpush.bf16.msra.mxu0 %v331
    %341 = vmatmul.bf16.gmra.mxu0 %v327
    %v342 = vpop.f32.mrf.mxu0
    %v343 = vadd.f32 %v323, %v342
    %v344 = vpop.f32.mrf.mxu0
    %v345 = vadd.f32 %v323, %v344
    %346 = vdwg.mxu0
    %v347 = vld [vmem:[%s1] sm:$0x7]
    %v348 = vld [vmem:[%s1 + $0x4] sm:$0x7]
    %v351 = vrot.slane %v347, 1
    %v352 = vrot.slane %v347, 2
    %v353 = vrot.slane %v348, 1
    %v354 = vrot.slane %v348, 2
    %v355 = vld [vmem:[#allocation13] sm:$0x3]
    %356 = vst [vmem:[#allocation1] ss:$9 sm:$0xff] %v347
    %s357 = scalar_lea.vmem [#allocation1], 1
    %358 = vst [vmem:[%s357] ss:$9 sm:$0xff] %v351
    %s359 = scalar_lea.vmem [#allocation1], 2
    %360 = vst [vmem:[%s359] ss:$9 sm:$0xff] %v352
    %s361 = scalar_lea.vmem [#allocation1], 3
    %362 = vst [vmem:[%s361] ss:$9 sm:$0xff] %v348
    %s363 = scalar_lea.vmem [#allocation1], 4
    %364 = vst [vmem:[%s363] ss:$9 sm:$0xff] %v353
    %s365 = scalar_lea.vmem [#allocation1], 5
    %366 = vst [vmem:[%s365] ss:$9 sm:$0xff] %v354
    %v367 = vld [vmem:[#allocation1] sm:$0xff]
    %v369 = vpack.c.bf16 %v367, %v367
    %v370 = vld [vmem:[#allocation14] sm:$0x1]
    %v372 = vperm.slane %v370, 0
    %v375 = vsel %vm325, %v369, 0
    %v378 = vsel %vm329, %v355, 0
    %380 = vmatpush.bf16.msra.mxu0 0
    %381 = vmatpush.bf16.msra.mxu0 0
    %382 = vmatpush.bf16.msra.mxu0 0
    %383 = vmatpush.bf16.msra.mxu0 0
    %384 = vmatpush.bf16.msra.mxu0 0
    %385 = vmatpush.bf16.msra.mxu0 0
    %386 = vmatpush.bf16.msra.mxu0 0
    %387 = vmatpush.bf16.msra.mxu0 %v378
    %388 = vmatmul.bf16.gmra.mxu0 %v375
    %v389 = vpop.f32.mrf.mxu0
    %v390 = vadd.f32 %v372, %v389
    %v391 = vpop.f32.mrf.mxu0
    %392 = vdwg.mxu0
    %v394 = vrot.slane %v390, 1
    %v395 = vrot.slane %v390, 2
    %v396 = vrot.slane %v390, 3
    %v397 = vrot.slane %v390, 4
    %v398 = vrot.slane %v390, 5
    %v400 = vld [vmem:[#allocation5] sm:$0x3]
    %v401 = vld [vmem:[#allocation17] sm:$0x1]
    %v402 = vpack.c.bf16 %v400, %v400
    %v403 = vld [vmem:[#allocation19] sm:$0x1]
    %v405 = vperm.slane %v403, 0
    %vm407 = vcmask 15360
    %v409 = vsel %vm407, %v402, 0
    %vm411 = vcmask 1040384
    %v413 = vsel %vm411, %v401, 0
    %415 = vmatpush.bf16.msra.mxu0 0
    %416 = vmatpush.bf16.msra.mxu0 0
    %417 = vmatpush.bf16.msra.mxu0 0
    %418 = vmatpush.bf16.msra.mxu0 0
    %419 = vmatpush.bf16.msra.mxu0 0
    %420 = vmatpush.bf16.msra.mxu0 0
    %421 = vmatpush.bf16.msra.mxu0 0
    %422 = vmatpush.bf16.msra.mxu0 %v413
    %423 = vmatmul.bf16.gmra.mxu0 %v409
    %v424 = vpop.f32.mrf.mxu0
    %v425 = vadd.f32 %v405, %v424
    %v426 = vpop.f32.mrf.mxu0
    %427 = vdwg.mxu0
    %v429 = vrot.slane %v425, 1
    %v430 = vld [vmem:[#allocation2] sm:$0x3]
    %v431 = vperm.slane %v430, 0
    %v432 = vlaneseq
    %v433 = vshrl.u32 %v432, 7
    %435 = vset.pattern.permute.xlu0 %v433
    %436 = vperm.xlu0 %435, %v431
    %v437 = vpop.permute.xlu0 %436
    %v438 = vperm.slane %v430, 1
    %v439 = vlaneseq
    %v440 = vshrl.u32 %v439, 7
    %442 = vset.pattern.permute.xlu0 %v440
    %443 = vperm.xlu0 %442, %v438
    %v444 = vpop.permute.xlu0 %443
    %v445 = vld [vmem:[#allocation16] sm:$0x1]
    %v447 = vperm.slane %v445, 0
    %v449 = vmul.f32 %v437, %v447
    %v450 = vmul.f32 %v444, %v447
    %v451 = vperm.slane %v425, 0
    %v452 = vperm.slane %v429, 0
    %v455 = vadd.f32 %v449, %v451
    %v456 = vadd.f32 %v450, %v452
    %v457 = vld [vmem:[%s29] sm:$0xf]
    %v458 = vld [vmem:[%s29 + $0x4] sm:$0xf]
    %v459 = vld [vmem:[%s29 + $0x8] sm:$0xf]
    %v460 = vld [vmem:[%s29 + $0xc] sm:$0xf]
    %v461 = vpack.c.bf16 %v345, %v343
    %v462 = vld [vmem:[#allocation20] sm:$0x1]
    %v464 = vperm.slane %v462, 0
    %v470 = vunpack.c.l.b16 %v457
    %v471 = vunpack.c.l.b16 %v458
    %v472 = vunpack.c.l.b16 %v459
    %v473 = vunpack.c.l.b16 %v460
    %v474 = vpack.c.b16 %v471, %v470
    %v475 = vpack.c.b16 %v473, %v472
    %vm478 = vcmask 261120
    %v480 = vsel %vm478, %v461, 0
    %482 = vmatpush.bf16.msra.mxu0 0
    %483 = vmatpush.bf16.msra.mxu0 0
    %484 = vmatpush.bf16.msra.mxu0 0
    %485 = vmatpush.bf16.msra.mxu0 0
    %486 = vmatpush.bf16.msra.mxu0 0
    %487 = vmatpush.bf16.msra.mxu0 0
    %488 = vmatpush.bf16.msra.mxu0 %v475
    %489 = vmatpush.bf16.msra.mxu0 %v474
    %490 = vmatmul.bf16.gmra.mxu0 %v480
    %v491 = vpop.f32.mrf.mxu0
    %v492 = vadd.f32 %v464, %v491
    %v493 = vpop.f32.mrf.mxu0
    %v494 = vadd.f32 %v464, %v493
    %495 = vdwg.mxu0
    %v496 = vld [vmem:[%s35] sm:$0xf]
    %v497 = vld [vmem:[%s35 + $0x4] sm:$0xf]
    %v498 = vld [vmem:[%s35 + $0x8] sm:$0xf]
    %v499 = vld [vmem:[%s35 + $0xc] sm:$0xf]
    %v500 = vpack.c.bf16 %v456, %v455
    %v505 = vunpack.c.l.b16 %v496
    %v506 = vunpack.c.l.b16 %v497
    %v507 = vunpack.c.l.b16 %v498
    %v508 = vunpack.c.l.b16 %v499
    %v509 = vpack.c.b16 %v506, %v505
    %v510 = vpack.c.b16 %v508, %v507
    %v514 = vsel %vm478, %v500, 0
    %516 = vmatpush.bf16.msra.mxu0 0
    %517 = vmatpush.bf16.msra.mxu0 0
    %518 = vmatpush.bf16.msra.mxu0 0
    %519 = vmatpush.bf16.msra.mxu0 0
    %520 = vmatpush.bf16.msra.mxu0 0
    %521 = vmatpush.bf16.msra.mxu0 0
    %522 = vmatpush.bf16.msra.mxu0 %v510
    %523 = vmatpush.bf16.msra.mxu0 %v509
    %524 = vmatmul.bf16.gmra.mxu0 %v514
    %v525 = vpop.f32.mrf.mxu0
    %v526 = vadd.f32 0.0, %v525
    %v527 = vpop.f32.mrf.mxu0
    %v528 = vadd.f32 0.0, %v527
    %529 = vdwg.mxu0
    %530 = vst [vmem:[#allocation1] ss:$9 sm:$0xff] %v390
    %s531 = scalar_lea.vmem [#allocation1], 1
    %532 = vst [vmem:[%s531] ss:$9 sm:$0xff] %v396
    %v533 = vld [vmem:[#allocation1] sm:$0xff]
    %535 = vst [vmem:[#allocation1] ss:$9 sm:$0xff] %v394
    %s536 = scalar_lea.vmem [#allocation1], 1
    %537 = vst [vmem:[%s536] ss:$9 sm:$0xff] %v397
    %v538 = vld [vmem:[#allocation1] sm:$0xff]
    %539 = vrot.lane.b32.xlu0 %v538, 32
    %v540 = vpop.permute.xlu0 %539
    %542 = vst [vmem:[#allocation1] ss:$9 sm:$0xff] %v395
    %s543 = scalar_lea.vmem [#allocation1], 1
    %544 = vst [vmem:[%s543] ss:$9 sm:$0xff] %v398
    %v545 = vld [vmem:[#allocation1] sm:$0xff]
    %546 = vrot.lane.b32.xlu0 %v545, 64
    %v547 = vpop.permute.xlu0 %546
    %v549 = vsel %vm478, %v533, %v540
    %vm550 = vcmask 523264
    %v551 = vsel %vm550, %v549, %v547
    %v552 = vld [vmem:[%s33] sm:$0xf]
    %v553 = vld [vmem:[%s33 + $0x4] sm:$0xf]
    %v554 = vld [vmem:[%s33 + $0x8] sm:$0xf]
    %v555 = vld [vmem:[%s33 + $0xc] sm:$0xf]
    %v556 = vld [vmem:[%s33 + $0x10] sm:$0xf]
    %v557 = vld [vmem:[%s33 + $0x14] sm:$0xf]
    %v558 = vld [vmem:[%s33 + $0x18] sm:$0xf]
    %v559 = vld [vmem:[%s33 + $0x1c] sm:$0xf]
    %v560 = vld [vmem:[%s33 + $0x20] sm:$0xf]
    %v561 = vld [vmem:[%s33 + $0x24] sm:$0xf]
    %v562 = vld [vmem:[%s33 + $0x28] sm:$0xf]
    %v563 = vld [vmem:[%s33 + $0x2c] sm:$0xf]
    %v564 = vpack.c.bf16 %v551, %v551
    %v565 = vld [vmem:[%s37] sm:$0x1]
    %v567 = vperm.slane %v565, 0
    %v581 = vunpack.c.l.b16 %v552
    %v582 = vunpack.c.l.b16 %v553
    %v583 = vunpack.c.l.b16 %v554
    %v584 = vunpack.c.l.b16 %v555
    %v585 = vunpack.c.l.b16 %v556
    %v586 = vunpack.c.l.b16 %v557
    %v587 = vunpack.c.l.b16 %v558
    %v588 = vunpack.c.l.b16 %v559
    %v589 = vunpack.c.l.b16 %v560
    %v590 = vunpack.c.l.b16 %v561
    %v591 = vunpack.c.l.b16 %v562
    %v592 = vunpack.c.l.b16 %v563
    %v593 = vpack.c.b16 %v582, %v581
    %v594 = vpack.c.b16 %v584, %v583
    %v595 = vpack.c.b16 %v586, %v585
    %v596 = vpack.c.b16 %v588, %v587
    %v597 = vpack.c.b16 %v590, %v589
    %v598 = vpack.c.b16 %v592, %v591
    %vm605 = vcmask 785408
    %v607 = vsel %vm605, %v564, 0
    %609 = vmatpush.bf16.msra.mxu0 0
    %610 = vmatpush.bf16.msra.mxu0 0
    %611 = vmatpush.bf16.msra.mxu0 %v598
    %612 = vmatpush.bf16.msra.mxu0 %v597
    %613 = vmatpush.bf16.msra.mxu0 %v596
    %614 = vmatpush.bf16.msra.mxu0 %v595
    %615 = vmatpush.bf16.msra.mxu0 %v594
    %616 = vmatpush.bf16.msra.mxu0 %v593
    %617 = vmatmul.bf16.gmra.mxu0 %v607
    %v618 = vpop.f32.mrf.mxu0
    %v619 = vadd.f32 %v567, %v618
    %v620 = vpop.f32.mrf.mxu0
    %621 = vdwg.mxu0
    %v622 = vld [vmem:[%s45] sm:$0xf]
    %v623 = vld [vmem:[%s45 + $0x4] sm:$0xf]
    %v624 = vld [vmem:[%s45 + $0x8] sm:$0xf]
    %v625 = vld [vmem:[%s45 + $0xc] sm:$0xf]
    %v626 = vld [vmem:[%s45 + $0x10] sm:$0xf]
    %v627 = vld [vmem:[%s45 + $0x14] sm:$0xf]
    %v628 = vld [vmem:[%s45 + $0x18] sm:$0xf]
    %v629 = vld [vmem:[%s45 + $0x1c] sm:$0xf]
    %632 = vrot.lane.b32.xlu0 %v526, 32
    %v633 = vpop.permute.xlu0 %632
    %634 = vrot.lane.b32.xlu0 %v528, 32
    %v635 = vpop.permute.xlu0 %634
    %v638 = vsel %vm478, %v492, %v633
    %v639 = vsel %vm478, %v494, %v635
    %v640 = vpack.c.bf16 %v639, %v638
    %v649 = vunpack.c.l.b16 %v622
    %v650 = vunpack.c.l.b16 %v623
    %v651 = vunpack.c.l.b16 %v624
    %v652 = vunpack.c.l.b16 %v625
    %v653 = vunpack.c.l.b16 %v626
    %v654 = vunpack.c.l.b16 %v627
    %v655 = vunpack.c.l.b16 %v628
    %v656 = vunpack.c.l.b16 %v629
    %v657 = vpack.c.b16 %v650, %v649
    %v658 = vpack.c.b16 %v652, %v651
    %v659 = vpack.c.b16 %v654, %v653
    %v660 = vpack.c.b16 %v656, %v655
    %v666 = vsel %vm550, %v640, 0
    %668 = vmatpush.bf16.msra.mxu0 0
    %669 = vmatpush.bf16.msra.mxu0 0
    %670 = vmatpush.bf16.msra.mxu0 0
    %671 = vmatpush.bf16.msra.mxu0 0
    %672 = vmatpush.bf16.msra.mxu0 %v660
    %673 = vmatpush.bf16.msra.mxu0 %v659
    %674 = vmatpush.bf16.msra.mxu0 %v658
    %675 = vmatpush.bf16.msra.mxu0 %v657
    %676 = vmatmul.bf16.gmra.mxu0 %v666
    %v677 = vpop.f32.mrf.mxu0
    %v678 = vadd.f32 0.0, %v677
    %v679 = vpop.f32.mrf.mxu0
    %v680 = vadd.f32 0.0, %v679
    %681 = vdwg.mxu0
    %v682 = vpack.c.bf16 %v619, %v619
    %v684 = vsel %vm478, %v682, 0
    %686 = vmatpush.bf16.msra.mxu0 0
    %687 = vmatpush.bf16.msra.mxu0 0
    %688 = vmatpush.bf16.msra.mxu0 0
    %689 = vmatpush.bf16.msra.mxu0 0
    %690 = vmatpush.bf16.msra.mxu0 0
    %691 = vmatpush.bf16.msra.mxu0 0
    %692 = vmatpush.bf16.msra.mxu0 %v660
    %693 = vmatpush.bf16.msra.mxu0 %v659
    %694 = vmatmul.bf16.gmra.mxu0 %v684
    %v695 = vpop.f32.mrf.mxu0
    %v696 = vadd.f32 0.0, %v695
    %v697 = vpop.f32.mrf.mxu0
    %698 = vdwg.mxu0
    %v700 = vrot.slane %v696, 1
    %v701 = vperm.slane %v696, 0
    %v702 = vperm.slane %v700, 0
    %v705 = vadd.f32 %v678, %v701
    %v706 = vadd.f32 %v680, %v702
    %v707 = vld [vmem:[#allocation8] sm:$0x3]
    %v708 = vld [vmem:[#allocation10] sm:$0x3]
    %v709 = vld [vmem:[#allocation22] sm:$0xf]
    %v710 = vld [vmem:[#allocation22 + $0x4] sm:$0xf]
    %v711 = vld [vmem:[#allocation22 + $0x8] sm:$0xf]
    %v712 = vld [vmem:[#allocation22 + $0xc] sm:$0xf]
    %v713 = vpack.c.bf16 %v390, %v390
    %v714 = vpack.c.bf16 %v396, %v396
    %v715 = vld [vmem:[#allocation23] sm:$0xf]
    %v716 = vld [vmem:[#allocation23 + $0x4] sm:$0xf]
    %v717 = vld [vmem:[#allocation23 + $0x8] sm:$0xf]
    %v718 = vld [vmem:[#allocation23 + $0xc] sm:$0xf]
    %v719 = vpack.c.bf16 %v707, %v707
    %v724 = vunpack.c.l.b16 %v715
    %v725 = vunpack.c.l.b16 %v716
    %v726 = vunpack.c.l.b16 %v717
    %v727 = vunpack.c.l.b16 %v718
    %v728 = vpack.c.b16 %v725, %v724
    %v729 = vpack.c.b16 %v727, %v726
    %v733 = vsel %vm478, %v719, 0
    %735 = vmatpush.bf16.msra.mxu0 0
    %736 = vmatpush.bf16.msra.mxu0 0
    %737 = vmatpush.bf16.msra.mxu0 0
    %738 = vmatpush.bf16.msra.mxu0 0
    %739 = vmatpush.bf16.msra.mxu0 0
    %740 = vmatpush.bf16.msra.mxu0 0
    %741 = vmatpush.bf16.msra.mxu0 %v729
    %742 = vmatpush.bf16.msra.mxu0 %v728
    %743 = vmatmul.bf16.gmra.mxu0 %v733
    %v744 = vpop.f32.mrf.mxu0
    %v745 = vadd.f32 0.0, %v744
    %v746 = vpop.f32.mrf.mxu0
    %747 = vdwg.mxu0
    %v750 = vunpack.c.l.b16 %v713
    %v751 = vunpack.c.l.b16 %v714
    %v752 = vrot.slane %v751, 7
    %vm753 = vcmask 1041409
    %v754 = vsel %vm753, %v752, %v750
    %v755 = vpack.c.b16 %v754, %v754
    %v760 = vunpack.c.l.b16 %v709
    %v761 = vunpack.c.l.b16 %v710
    %v762 = vunpack.c.l.b16 %v711
    %v763 = vunpack.c.l.b16 %v712
    %v764 = vpack.c.b16 %v761, %v760
    %v765 = vpack.c.b16 %v763, %v762
    %v769 = vsel %vm478, %v755, 0
    %771 = vmatpush.bf16.msra.mxu0 0
    %772 = vmatpush.bf16.msra.mxu0 0
    %773 = vmatpush.bf16.msra.mxu0 0
    %774 = vmatpush.bf16.msra.mxu0 0
    %775 = vmatpush.bf16.msra.mxu0 0
    %776 = vmatpush.bf16.msra.mxu0 0
    %777 = vmatpush.bf16.msra.mxu0 %v765
    %778 = vmatpush.bf16.msra.mxu0 %v764
    %779 = vmatmul.bf16.gmra.mxu0 %v769
    %v780 = vpop.f32.mrf.mxu0
    %v781 = vadd.f32 %v745, %v780
    %v782 = vpop.f32.mrf.mxu0
    %783 = vdwg.mxu0
    %v784 = vld [vmem:[%s43] sm:$0x1]
    %v786 = vperm.slane %v784, 0
    %v788 = vadd.f32 %v781, %v786
    %v789 = vxor.u32 %v788, 2147483648
    %v790 = vmul.f32 %v789, 1.442695
    %v791 = vpow.pop %v790
    %v792 = vadd.f32 %v791, 1.0
    %v793 = vrcp.pop %v792
    %v794 = vmul.f32 %v792, %v793
    %v795 = vsub.f32 1.0, %v794
    %v796 = vmul.f32 %v793, %v795
    %v797 = vadd.f32 %v793, %v796
    %vm798 = vweird.f32 %v792
    %vm799 = vweird.f32 %v793
    %vm800 = vmor %vm798, %vm799
    %v801 = vsel %vm800, %v793, %v797
    %v802 = vand.u32 2147483647, %v792
    %vm803 = vcmp.eq.f32.partialorder %v802, 8.507059e+37
    %v804 = vand.u32 %v792, 2147483648
    %v805 = vor.u32 1.1754944e-38, %v804
    %v806 = vsel %vm803, %v805, %v801
    %v807 = vmul.f32 1.0, %v806
    %v808 = vtanh.pop %v788
    %810 = vrot.lane.b32.xlu0 %v708, 32
    %v811 = vpop.permute.xlu0 %810
    %v813 = vmul.f32 %v807, %v811
    %815 = vrot.lane.b32.xlu0 %v808, 64
    %v816 = vpop.permute.xlu0 %815
    %v818 = vmul.f32 %v807, %v816
    %820 = vrot.lane.b32.xlu0 %v818, 32
    %v821 = vpop.permute.xlu0 %820
    %v823 = vadd.f32 %v813, %v821
    %v824 = vtanh.pop %v823
    %826 = vrot.lane.b32.xlu0 %v824, 64
    %v827 = vpop.permute.xlu0 %826
    %v829 = vmul.f32 %v807, %v827
    %v830 = vld [vmem:[#allocation7] sm:$0x3]
    %v831 = vmul.f32 %v830, 100000.0
    %v832 = vld [vmem:[%s47] sm:$0xf]
    %v833 = vld [vmem:[%s47 + $0x4] sm:$0xf]
    %v834 = vld [vmem:[%s47 + $0x8] sm:$0xf]
    %v835 = vld [vmem:[%s47 + $0xc] sm:$0xf]
    %v836 = vpack.c.bf16 %v829, %v829
    %v837 = vld [vmem:[%s49] sm:$0x1]
    %v839 = vperm.slane %v837, 0
    %842 = vrot.lane.b32.xlu0 %v836, 32
    %v843 = vpop.permute.xlu0 %842
    %v848 = vunpack.c.l.b16 %v832
    %v849 = vunpack.c.l.b16 %v833
    %v850 = vunpack.c.l.b16 %v834
    %v851 = vunpack.c.l.b16 %v835
    %v852 = vpack.c.b16 %v849, %v848
    %v853 = vpack.c.b16 %v851, %v850
    %v857 = vsel %vm478, %v843, 0
    %859 = vmatpush.bf16.msra.mxu0 0
    %860 = vmatpush.bf16.msra.mxu0 0
    %861 = vmatpush.bf16.msra.mxu0 0
    %862 = vmatpush.bf16.msra.mxu0 0
    %863 = vmatpush.bf16.msra.mxu0 0
    %864 = vmatpush.bf16.msra.mxu0 0
    %865 = vmatpush.bf16.msra.mxu0 %v853
    %866 = vmatpush.bf16.msra.mxu0 %v852
    %867 = vmatmul.bf16.gmra.mxu0 %v857
    %v868 = vpop.f32.mrf.mxu0
    %v869 = vadd.f32 %v839, %v868
    %v870 = vpop.f32.mrf.mxu0
    %871 = vdwg.mxu0
    %v873 = vrot.slane %v869, 1
    %v874 = vperm.slane %v869, 0
    %v875 = vperm.slane %v873, 0
    %v878 = vadd.f32 %v705, %v874
    %v879 = vadd.f32 %v706, %v875
    %v880 = vtanh.pop %v878
    %v881 = vtanh.pop %v879
    %v882 = vld [vmem:[%s51] sm:$0x1]
    %v884 = vperm.slane %v882, 0
    %v886 = vmul.f32 %v880, %v884
    %v887 = vmul.f32 %v881, %v884
    %v888 = vsel %vm478, %v886, 0.0
    %889 = vadd.xlane.f32.xlu0 %v888
    %v890 = vpop.xlane.xlu0 %889
    %v891 = vsel %vm478, %v887, 0.0
    %892 = vadd.xlane.f32.xlu0 %v891
    %v893 = vpop.xlane.xlu0 %892
    %v895 = vperm.slane %v831, 0
    %v896 = vlaneseq
    %v897 = vshrl.u32 %v896, 7
    %899 = vset.pattern.permute.xlu0 %v897
    %900 = vperm.xlu0 %899, %v895
    %v901 = vpop.permute.xlu0 %900
    %v902 = vperm.slane %v831, 1
    %v903 = vlaneseq
    %v904 = vshrl.u32 %v903, 7
    %906 = vset.pattern.permute.xlu0 %v904
    %907 = vperm.xlu0 %906, %v902
    %v908 = vpop.permute.xlu0 %907
    %v911 = vsub.f32 %v890, %v901
    %v912 = vsub.f32 %v893, %v908
    %915 = vset.pattern.permute.xlu0 0
    %916 = vperm.xlu0 %915, %v911
    %v917 = vpop.permute.xlu0 %916
    %918 = vset.pattern.permute.xlu0 0
    %919 = vperm.xlu0 %918, %v912
    %v920 = vpop.permute.xlu0 %919
    %v921 = vlaneseq
    %v922 = vand.u32 %v921, 127
    %v923 = vperm.slane %v917, %v922
    %v924 = vperm.slane %v920, %v922
    %v925 = vsel %vm753, %v924, %v923
    %vm927 = vcmask 58368
    %v928 = vsel %vm927, %v925, -inf
    %929 = vmax.xlane.f32.xlu0 %v928
    %v930 = vpop.xlane.xlu0 %929
    %v932 = vperm.slane %v930, 0
    %v933 = vperm.slane %v930, 1
    %v936 = vsub.f32 %v911, %v932
    %v937 = vsub.f32 %v912, %v933
    %v938 = vmul.f32 %v936, 1.442695
    %v939 = vpow.pop %v938
    %v940 = vmul.f32 %v937, 1.442695
    %v941 = vpow.pop %v940
    %944 = vset.pattern.permute.xlu0 0
    %945 = vperm.xlu0 %944, %v939
    %v946 = vpop.permute.xlu0 %945
    %947 = vset.pattern.permute.xlu0 0
    %948 = vperm.xlu0 %947, %v941
    %v949 = vpop.permute.xlu0 %948
    %v950 = vperm.slane %v946, %v922
    %v951 = vperm.slane %v949, %v922
    %v952 = vsel %vm753, %v951, %v950
    %v954 = vsel %vm927, %v952, 0.0
    %955 = vadd.xlane.f32.xlu0 %v954
    %v956 = vpop.xlane.xlu0 %955
    %v957 = vrcp.pop %v956
    %v959 = vperm.slane %v957, 0
    %v960 = vperm.slane %v957, 1
    %v963 = vmul.f32 %v939, %v959
    %v964 = vmul.f32 %v941, %v960
    %966 = vset.pattern.permute.xlu0 0
    %967 = vperm.xlu0 %966, %v963
    %v968 = vpop.permute.xlu0 %967
    %971 = vset.pattern.permute.xlu0 0
    %972 = vperm.xlu0 %971, %v964
    %v973 = vpop.permute.xlu0 %972
    %v975 = vmul.f32 %v968, %v492
    %v976 = vmul.f32 %v973, %v494
    %v977 = vsel %vm478, %v975, 0.0
    %v978 = vrot.slane %v977, 4
    %v979 = vadd.f32 %v977, %v978
    %v980 = vrot.slane %v979, 2
    %v981 = vadd.f32 %v979, %v980
    %v982 = vrot.slane %v981, 1
    %v983 = vadd.f32 %v981, %v982
    %v984 = vsel %vm478, %v976, 0.0
    %v985 = vrot.slane %v984, 4
    %v986 = vadd.f32 %v984, %v985
    %v987 = vrot.slane %v986, 2
    %v988 = vadd.f32 %v986, %v987
    %v989 = vrot.slane %v988, 1
    %v990 = vadd.f32 %v988, %v989
    %s991 = scalar_lea.vmem %s47, 16
    %v992 = vld [vmem:[%s991] sm:$0xf]
    %v993 = vld [vmem:[%s991 + $0x4] sm:$0xf]
    %v994 = vld [vmem:[%s991 + $0x8] sm:$0xf]
    %v995 = vld [vmem:[%s991 + $0xc] sm:$0xf]
    %v996 = vpack.c.bf16 %v983, %v983
    %v997 = vpack.c.bf16 %v990, %v990
    %s998 = scalar_lea.vmem %s49, 1
    %v999 = vld [vmem:[%s998] sm:$0x1]
    %v1001 = vperm.slane %v999, 0
    %v1005 = vunpack.c.l.b16 %v996
    %v1006 = vunpack.c.l.b16 %v997
    %v1007 = vsel %vm753, %v1006, %v1005
    %v1008 = vpack.c.b16 %v1007, %v1007
    %v1013 = vunpack.c.l.b16 %v992
    %v1014 = vunpack.c.l.b16 %v993
    %v1015 = vunpack.c.l.b16 %v994
    %v1016 = vunpack.c.l.b16 %v995
    %v1017 = vpack.c.b16 %v1014, %v1013
    %v1018 = vpack.c.b16 %v1016, %v1015
    %v1022 = vsel %vm478, %v1008, 0
    %1024 = vmatpush.bf16.msra.mxu0 0
    %1025 = vmatpush.bf16.msra.mxu0 0
    %1026 = vmatpush.bf16.msra.mxu0 0
    %1027 = vmatpush.bf16.msra.mxu0 0
    %1028 = vmatpush.bf16.msra.mxu0 0
    %1029 = vmatpush.bf16.msra.mxu0 0
    %1030 = vmatpush.bf16.msra.mxu0 %v1018
    %1031 = vmatpush.bf16.msra.mxu0 %v1017
    %1032 = vmatmul.bf16.gmra.mxu0 %v1022
    %v1033 = vpop.f32.mrf.mxu0
    %v1034 = vadd.f32 %v1001, %v1033
    %v1035 = vpop.f32.mrf.mxu0
    %1036 = vdwg.mxu0
    %v1038 = vrot.slane %v1034, 1
    %v1039 = vperm.slane %v1034, 0
    %v1040 = vperm.slane %v1038, 0
    %1041 = vrot.lane.b32.xlu0 %v1039, 32
    %v1042 = vpop.permute.xlu0 %1041
    %1043 = vrot.lane.b32.xlu0 %v1040, 32
    %v1044 = vpop.permute.xlu0 %1043
    %v1047 = vadd.f32 %v705, %v1042
    %v1048 = vadd.f32 %v706, %v1044
    %v1049 = vtanh.pop %v1047
    %v1050 = vtanh.pop %v1048
    %s1051 = scalar_lea.vmem %s51, 1
    %v1052 = vld [vmem:[%s1051] sm:$0x1]
    %v1054 = vperm.slane %v1052, 0
    %1055 = vrot.lane.b32.xlu0 %v1054, 32
    %v1056 = vpop.permute.xlu0 %1055
    %v1058 = vmul.f32 %v1049, %v1056
    %v1059 = vmul.f32 %v1050, %v1056
    %1062 = vrot.lane.b32.xlu0 %v1058, 96
    %v1063 = vpop.permute.xlu0 %1062
    %1064 = vrot.lane.b32.xlu0 %v1059, 96
    %v1065 = vpop.permute.xlu0 %1064
    %v1068 = vsel %vm478, %v1063, 0.0
    %1069 = vadd.xlane.f32.xlu0 %v1068
    %v1070 = vpop.xlane.xlu0 %1069
    %v1071 = vsel %vm478, %v1065, 0.0
    %1072 = vadd.xlane.f32.xlu0 %v1071
    %v1073 = vpop.xlane.xlu0 %1072
    %v1074 = vsub.f32 %v1070, %v901
    %v1075 = vsub.f32 %v1073, %v908
    %1078 = vset.pattern.permute.xlu0 0
    %1079 = vperm.xlu0 %1078, %v1074
    %v1080 = vpop.permute.xlu0 %1079
    %1081 = vset.pattern.permute.xlu0 0
    %1082 = vperm.xlu0 %1081, %v1075
    %v1083 = vpop.permute.xlu0 %1082
    %v1084 = vperm.slane %v1080, %v922
    %v1085 = vperm.slane %v1083, %v922
    %v1086 = vsel %vm753, %v1085, %v1084
    %v1088 = vsel %vm927, %v1086, -inf
    %1089 = vmax.xlane.f32.xlu0 %v1088
    %v1090 = vpop.xlane.xlu0 %1089
    %v1092 = vperm.slane %v1090, 0
    %v1093 = vperm.slane %v1090, 1
    %v1096 = vsub.f32 %v1074, %v1092
    %v1097 = vsub.f32 %v1075, %v1093
    %v1098 = vmul.f32 %v1096, 1.442695
    %v1099 = vpow.pop %v1098
    %v1100 = vmul.f32 %v1097, 1.442695
    %v1101 = vpow.pop %v1100
    %1104 = vset.pattern.permute.xlu0 0
    %1105 = vperm.xlu0 %1104, %v1099
    %v1106 = vpop.permute.xlu0 %1105
    %1107 = vset.pattern.permute.xlu0 0
    %1108 = vperm.xlu0 %1107, %v1101
    %v1109 = vpop.permute.xlu0 %1108
    %v1110 = vperm.slane %v1106, %v922
    %v1111 = vperm.slane %v1109, %v922
    %v1112 = vsel %vm753, %v1111, %v1110
    %v1114 = vsel %vm927, %v1112, 0.0
    %1115 = vadd.xlane.f32.xlu0 %v1114
    %v1116 = vpop.xlane.xlu0 %1115
    %v1117 = vlog2.pop %v1116
    %v1118 = vmul.f32 %v1117, 0.6931472
    %v1120 = vperm.slane %v1118, 0
    %v1121 = vperm.slane %v1118, 1
    %v1124 = vsub.f32 %v1096, %v1120
    %v1125 = vsub.f32 %v1097, %v1121
    %1126 = vst.msk [vmem:[#allocation25] sm:$0x3] %vm927, %v1086
    %1129 = vset.pattern.permute.xlu0 0
    %1130 = vperm.xlu0 %1129, %v1124
    %v1131 = vpop.permute.xlu0 %1130
    %1132 = vset.pattern.permute.xlu0 0
    %1133 = vperm.xlu0 %1132, %v1125
    %v1134 = vpop.permute.xlu0 %1133
    %v1135 = vperm.slane %v1131, %v922
    %v1136 = vperm.slane %v1134, %v922
    %v1137 = vsel %vm753, %v1136, %v1135
    %1139 = vst.msk [vmem:[#allocation28] sm:$0x3] %vm927, %v1137
    %v1140 = vmul.f32 %v1124, 1.442695
    %v1141 = vpow.pop %v1140
    %v1142 = vmul.f32 %v1125, 1.442695
    %v1143 = vpow.pop %v1142
    %1146 = vset.pattern.permute.xlu0 0
    %1147 = vperm.xlu0 %1146, %v1141
    %v1148 = vpop.permute.xlu0 %1147
    %1149 = vset.pattern.permute.xlu0 0
    %1150 = vperm.xlu0 %1149, %v1143
    %v1151 = vpop.permute.xlu0 %1150
    %v1152 = vperm.slane %v1148, %v922
    %v1153 = vperm.slane %v1151, %v922
    %v1154 = vsel %vm753, %v1153, %v1152
    %1156 = vst.msk [vmem:[#allocation26] sm:$0x3] %vm927, %v1154
    %1158 = vrot.lane.b32.xlu0 %v829, 32
    %v1159 = vpop.permute.xlu0 %1158
    %vm1161 = vcmask 254976
    %1162 = vst.msk [vmem:[#allocation29] sm:$0x3] %vm1161, %v1159
    %1164 = vrot.lane.b32.xlu0 %v823, 96
    %v1165 = vpop.permute.xlu0 %1164
    %1167 = vst.msk [vmem:[#allocation31] sm:$0x3] %vm1161, %v1165
    // Predicated region
    $region162: #{tpu_custom_call.1} parent=1 // pred_check
      _
    $region163: #{tpu_custom_call.1} parent=1 // pred_check_branch
      %1169 = sbr.rel (0) target = $region165
    $region164: #{tpu_custom_call.1} parent=1 // pred_region
      %1171 = vsyncadd [#allocation4], 0
      %s1173 = sshll.u32 [#allocation25], 4
      %s1174 = int_to_ptr.vmem [resolvable:$true] %s1173
      %s1175 = sshll.u32 %s53, 4
      %s1176 = int_to_ptr.hbm [resolvable:$true] %s1175
      %1178 = dma.vmem_to_hbm [thread:$0]  %s1174, 32, %s1176, [#allocation4]
    $region165: #{tpu_custom_call.1} parent=1 // pred_fallthru
      _
    // Predicated region
    $region166: #{tpu_custom_call.1} parent=1 // pred_check
      _
    $region167: #{tpu_custom_call.1} parent=1 // pred_check_branch
      %1180 = sbr.rel (0) target = $region169
    $region168: #{tpu_custom_call.1} parent=1 // pred_region
      %1182 = vsyncadd [#allocation27], 0
      %s1184 = sshll.u32 [#allocation26], 4
      %s1185 = int_to_ptr.vmem [resolvable:$true] %s1184
      %s1186 = sshll.u32 %s55, 4
      %s1187 = int_to_ptr.hbm [resolvable:$true] %s1186
      %1189 = dma.vmem_to_hbm [thread:$0]  %s1185, 32, %s1187, [#allocation27]
    $region169: #{tpu_custom_call.1} parent=1 // pred_fallthru
      _
    // Predicated region
    $region170: #{tpu_custom_call.1} parent=1 // pred_check
      _
    $region171: #{tpu_custom_call.1} parent=1 // pred_check_branch
      %1191 = sbr.rel (0) target = $region173
    $region172: #{tpu_custom_call.1} parent=1 // pred_region
      %1193 = vsyncadd [#allocation27], 0
      %s1195 = sshll.u32 [#allocation28], 4
      %s1196 = int_to_ptr.vmem [resolvable:$true] %s1195
      %s1197 = sshll.u32 %s57, 4
      %s1198 = int_to_ptr.hbm [resolvable:$true] %s1197
      %1200 = dma.vmem_to_hbm [thread:$0]  %s1196, 32, %s1198, [#allocation27]
    $region173: #{tpu_custom_call.1} parent=1 // pred_fallthru
      _
    // Predicated region
    $region174: #{tpu_custom_call.1} parent=1 // pred_check
      _
    $region175: #{tpu_custom_call.1} parent=1 // pred_check_branch
      %1202 = sbr.rel (0) target = $region177
    $region176: #{tpu_custom_call.1} parent=1 // pred_region
      %1204 = vsyncadd [#allocation30], 0
      %s1206 = sshll.u32 [#allocation29], 4
      %s1207 = int_to_ptr.vmem [resolvable:$true] %s1206
      %s1208 = sshll.u32 %s59, 4
      %s1209 = int_to_ptr.hbm [resolvable:$true] %s1208
      %1211 = dma.vmem_to_hbm [thread:$0]  %s1207, 32, %s1209, [#allocation30]
    $region177: #{tpu_custom_call.1} parent=1 // pred_fallthru
      _
    // Predicated region
    $region178: #{tpu_custom_call.1} parent=1 // pred_check
      _
    $region179: #{tpu_custom_call.1} parent=1 // pred_check_branch
      %1213 = sbr.rel (0) target = $region181
    $region180: #{tpu_custom_call.1} parent=1 // pred_region
      %1215 = vsyncadd [#allocation30], 0
      %s1217 = sshll.u32 [#allocation31], 4
      %s1218 = int_to_ptr.vmem [resolvable:$true] %s1217
      %s1219 = sshll.u32 %s61, 4
      %s1220 = int_to_ptr.hbm [resolvable:$true] %s1219
      %1222 = dma.vmem_to_hbm [thread:$0]  %s1218, 32, %s1220, [#allocation30]
    $region181: #{tpu_custom_call.1} parent=1 // pred_fallthru
      _
    // Predicated region
    $region182: #{tpu_custom_call.1} parent=1 // pred_check
      _
    $region183: #{tpu_custom_call.1} parent=1 // pred_check_branch
      %1224 = sbr.rel (0) target = $region185
    $region184: #{tpu_custom_call.1} parent=1 // pred_region
      %1226 = dma.done [#allocation4], 32
    $region185: #{tpu_custom_call.1} parent=1 // pred_fallthru
      _
    // Predicated region
    $region186: #{tpu_custom_call.1} parent=1 // pred_check
      _
    $region187: #{tpu_custom_call.1} parent=1 // pred_check_branch
      %1228 = sbr.rel (0) target = $region189
    $region188: #{tpu_custom_call.1} parent=1 // pred_region
      %1230 = dma.done [#allocation27], 32
    $region189: #{tpu_custom_call.1} parent=1 // pred_fallthru
      _
    // Predicated region
    $region190: #{tpu_custom_call.1} parent=1 // pred_check
      _
    $region191: #{tpu_custom_call.1} parent=1 // pred_check_branch
      %1232 = sbr.rel (0) target = $region193
    $region192: #{tpu_custom_call.1} parent=1 // pred_region
      %1234 = dma.done [#allocation27], 32
    $region193: #{tpu_custom_call.1} parent=1 // pred_fallthru
      _
    // Predicated region
    $region194: #{tpu_custom_call.1} parent=1 // pred_check
      _
    $region195: #{tpu_custom_call.1} parent=1 // pred_check_branch
      %1236 = sbr.rel (0) target = $region197
    $region196: #{tpu_custom_call.1} parent=1 // pred_region
      %1238 = dma.done [#allocation30], 32
    $region197: #{tpu_custom_call.1} parent=1 // pred_fallthru
      _
    // Predicated region
    $region198: #{tpu_custom_call.1} parent=1 // pred_check
      _
    $region199: #{tpu_custom_call.1} parent=1 // pred_check_branch
      %1240 = sbr.rel (0) target = $region201
    $region200: #{tpu_custom_call.1} parent=1 // pred_region
      %1242 = dma.done [#allocation30], 32
    $region201: #{tpu_custom_call.1} parent=1 // pred_fallthru
      _
    %1243 = vsyncpa [#allocation3], 1
    %1244 = vsyncpa [#allocation6], 1
    %1245 = vsyncpa [#allocation9], 1
    %1246 = vsyncpa [#allocation12], 1
    %1247 = vsyncpa [#allocation15], 1
    %1248 = vsyncpa [#allocation18], 1
    %1249 = vsyncpa [#allocation21], 1
    %1250 = vsyncpa [#allocation24], 1
    %1251 = vsyncpa [#allocation4], 1
    %1252 = vsyncpa [#allocation27], 1
    %1253 = vsyncpa [#allocation30], 1

</llo_original>
